<compile_context>
chip_gen: v7x
topology: tpu7x:2x2x1
jax: 0.10.0
libtpu: 0.0.40
codegen_flags: <defaults>
</compile_context>

<pallas_src>
import math
import functools

import jax
import jax.numpy as jnp
from jax import lax
from jax.experimental import pallas as pl
from jax.experimental.pallas import tpu as pltpu


# ----------------------------- kernels --------------------------------------


def _qkv_proj_kernel(x_ref, w_ref, b_ref, q_ref, k_ref, v_ref):
    """Fused Q/K/V projection for one (batch, seq-tile) block."""
    D = q_ref.shape[-1]
    x = x_ref[0].astype(jnp.bfloat16)                                  # (Tm, D)
    qkv = jnp.dot(x, w_ref[...], preferred_element_type=jnp.float32)   # (Tm, 3D) f32
    qkv = qkv + b_ref[...]
    q_ref[0] = qkv[:, :D].astype(q_ref.dtype)
    k_ref[0] = qkv[:, D:2 * D].astype(k_ref.dtype)
    v_ref[0] = qkv[:, 2 * D:].astype(v_ref.dtype)


def _flash_attn_out_kernel(q_ref, k_ref, v_ref, wo_ref, bo_ref, o_ref,
                           m_sc, l_sc, acc_sc):
    """Online-softmax attention over KV tiles + fused output projection."""
    ki = pl.program_id(2)

    @pl.when(ki == 0)
    def _():
        m_sc[...] = jnp.full_like(m_sc, -jnp.inf)
        l_sc[...] = jnp.zeros_like(l_sc)
        acc_sc[...] = jnp.zeros_like(acc_sc)

    q = q_ref[0]   # (Tq, D) bf16; softmax scale already folded into Q projection
    k = k_ref[0]   # (Tk, D) bf16
    # Contract last dims directly on the MXU (avoids an XLU transpose of K).
    s = lax.dot_general(q, k, dimension_numbers=(((1,), (1,)), ((), ())),
                        preferred_element_type=jnp.float32)            # (Tq, Tk) f32

    m_prev = m_sc[...]
    m_new = jnp.maximum(m_prev, jnp.max(s, axis=-1, keepdims=True))
    alpha = jnp.exp(m_prev - m_new)
    p = jnp.exp(s - m_new)                                             # f32 softmax math
    l_sc[...] = alpha * l_sc[...] + jnp.sum(p, axis=-1, keepdims=True)
    acc_sc[...] = alpha * acc_sc[...] + jnp.dot(
        p.astype(jnp.bfloat16), v_ref[0], preferred_element_type=jnp.float32)
    m_sc[...] = m_new

    @pl.when(ki == pl.num_programs(2) - 1)
    def _():
        attn = acc_sc[...] * pl.reciprocal(l_sc[...], approx=True)     # (Tq, D) f32
        out = jnp.dot(attn.astype(jnp.bfloat16), wo_ref[...],
                      preferred_element_type=jnp.float32) + bo_ref[...]
        o_ref[0] = out.astype(o_ref.dtype)


# ----------------------------- wrapper ---------------------------------------


@functools.partial(jax.jit, static_argnames=("d_model",))
def xformers_attention_pallas(x, params, d_model):
    """x: (B, S, D) float32.  params: dict of transposed f32 weights/biases."""
    B, S, D = x.shape
    assert D == d_model
    scale = 1.0 / math.sqrt(float(D))   # xformers default softmax scale (head dim = D)

    # Fold softmax scale into the Q projection; fuse QKV weights into one matmul;
    # cast MXU operands (weights) to bf16, keep biases f32.
    w_qkv = jnp.concatenate(
        [params["wq_t"] * scale, params["wk_t"], params["wv_t"]], axis=1
    ).astype(jnp.bfloat16)                                   # (D, 3D)
    b_qkv = jnp.concatenate(
        [params["bq"] * scale, params["bk"], params["bv"]], axis=1
    ).astype(jnp.float32)                                    # (1, 3D)
    wo = params["wo_t"].astype(jnp.bfloat16)                 # (D, D)
    bo = params["bo"].astype(jnp.float32)                    # (1, D)

    # Tile sizes (128 works on v5e's 4x128 MXU and v6e/v7x's 2x256 MXU).
    tm = min(128, S)
    tq = min(128, S)
    tk = min(128, S)
    assert S % tm == 0 and S % tq == 0 and S % tk == 0, "S must tile evenly"
    assert D % 128 == 0, "d_model must be a multiple of 128 for lane-dense tiles"

    # Explicit scoped-VMEM budget with headroom under v7x's 64 MiB physical VMEM.
    vmem_limit = 48 * 1024 * 1024

    # ---- Stage 1: fused QKV projection --------------------------------------
    q, k, v = pl.pallas_call(
        _qkv_proj_kernel,
        out_shape=(jax.ShapeDtypeStruct((B, S, D), jnp.bfloat16),) * 3,
        grid_spec=pltpu.PrefetchScalarGridSpec(
            num_scalar_prefetch=0,
            grid=(B, S // tm),
            in_specs=[
                pl.BlockSpec((1, tm, D), lambda b, i: (b, i, 0)),
                pl.BlockSpec((D, 3 * D), lambda b, i: (0, 0)),
                pl.BlockSpec((1, 3 * D), lambda b, i: (0, 0)),
            ],
            out_specs=[pl.BlockSpec((1, tm, D), lambda b, i: (b, i, 0))] * 3,
        ),
        compiler_params=pltpu.CompilerParams(
            dimension_semantics=("parallel", "parallel"),
            vmem_limit_bytes=vmem_limit,
        ),
    )(x, w_qkv, b_qkv)

    # ---- Stage 2: flash attention + output projection ------------------------
    out = pl.pallas_call(
        _flash_attn_out_kernel,
        out_shape=jax.ShapeDtypeStruct((B, S, D), x.dtype),
        grid_spec=pltpu.PrefetchScalarGridSpec(
            num_scalar_prefetch=0,
            grid=(B, S // tq, S // tk),
            in_specs=[
                pl.BlockSpec((1, tq, D), lambda b, qi, ki: (b, qi, 0)),
                pl.BlockSpec((1, tk, D), lambda b, qi, ki: (b, ki, 0)),
                pl.BlockSpec((1, tk, D), lambda b, qi, ki: (b, ki, 0)),
                pl.BlockSpec((D, D), lambda b, qi, ki: (0, 0)),
                pl.BlockSpec((1, D), lambda b, qi, ki: (0, 0)),
            ],
            out_specs=pl.BlockSpec((1, tq, D), lambda b, qi, ki: (b, qi, 0)),
            scratch_shapes=[
                pltpu.VMEM((tq, 1), jnp.float32),   # running max m
                pltpu.VMEM((tq, 1), jnp.float32),   # running denom l
                pltpu.VMEM((tq, D), jnp.float32),   # output accumulator
            ],
        ),
        compiler_params=pltpu.CompilerParams(
            dimension_semantics=("parallel", "parallel", "arbitrary"),
            vmem_limit_bytes=vmem_limit,
        ),
    )(q, k, v, wo, bo)
    return out


# ----------------------------- init & reference ------------------------------


def init_params(key, d_model):
    """Deterministic init mimicking nn.Linear default (uniform +-1/sqrt(fan_in))."""
    bound = 1.0 / math.sqrt(d_model)
    keys = jax.random.split(key, 8)
    # PyTorch weight is (out, in); we store the transpose (in, out) for the kernel.
    def w(k):
        return jax.random.uniform(k, (d_model, d_model), jnp.float32, -bound, bound).T
    def b(k):
        return jax.random.uniform(k, (1, d_model), jnp.float32, -bound, bound)
    return {
        "wq_t": w(keys[0]), "bq": b(keys[1]),
        "wk_t": w(keys[2]), "bk": b(keys[3]),
        "wv_t": w(keys[4]), "bv": b(keys[5]),
        "wo_t": w(keys[6]), "bo": b(keys[7]),
    }


def reference(x, params, d_model):
    """Pure-JAX f32 reference of the same forward pass."""
    scale = 1.0 / math.sqrt(float(d_model))
    q = x @ params["wq_t"] + params["bq"]
    k = x @ params["wk_t"] + params["bk"]
    v = x @ params["wv_t"] + params["bv"]
    s = jnp.einsum("bqd,bkd->bqk", q, k) * scale
    p = jax.nn.softmax(s, axis=-1)
    a = jnp.einsum("bqk,bkd->bqd", p, v)
    return a @ params["wo_t"] + params["bo"]


if __name__ == "__main__":
    # Small but tile-friendly shapes (lane-dense d_model = 128, S tiles by 128).
    B, S, d_model, n_heads = 2, 256, 128, 4   # n_heads unused by the forward math

    key = jax.random.PRNGKey(0)
    k_x, k_p = jax.random.split(key)
    x = jax.random.normal(k_x, (B, S, d_model), jnp.float32)
    params = init_params(k_p, d_model)

    out = xformers_attention_pallas(x, params, d_model)
    out = jax.block_until_ready(out)

    ref = reference(x, params, d_model)
    assert out.shape == (B, S, d_model)
    max_err = float(jnp.max(jnp.abs(out - ref)))
    # bf16 MXU operands + approx reciprocal -> ~1e-2-level deviation vs f32 ref.
    assert jnp.allclose(out, ref, atol=5e-2, rtol=5e-2), f"mismatch vs reference (max abs err {max_err})"

    print("KERNEL_OK")
</pallas_src>

<mosaic_0001>
module attributes {stable_mosaic.version = 11 : i64} {
  func.func @_qkv_proj_kernel(%arg0: i32, %arg1: i32, %arg2: memref<1x128x128xf32, #tpu.memory_space<vmem>>, %arg3: memref<128x384xbf16, #tpu.memory_space<vmem>>, %arg4: memref<1x384xf32, #tpu.memory_space<vmem>>, %arg5: memref<1x128x128xbf16, #tpu.memory_space<vmem>>, %arg6: memref<1x128x128xbf16, #tpu.memory_space<vmem>>, %arg7: memref<1x128x128xbf16, #tpu.memory_space<vmem>>) attributes {dimension_semantics = [#tpu.dimension_semantics<parallel>, #tpu.dimension_semantics<parallel>], iteration_bounds = array<i64: 2, 2>, scalar_prefetch = 0 : i64, scratch_operands = 0 : i64, tpu.core_type = #tpu.core_type<tc>, window_params = [{transform_indices = @transform_0, window_bounds = array<i64: 1, 128, 128>}, {pipeline_mode = #tpu.pipeline_mode<synchronous>, transform_indices = @transform_1, window_bounds = array<i64: 128, 384>}, {pipeline_mode = #tpu.pipeline_mode<synchronous>, transform_indices = @transform_2, window_bounds = array<i64: 1, 384>}, {transform_indices = @transform_3, window_bounds = array<i64: 1, 128, 128>}, {transform_indices = @transform_4, window_bounds = array<i64: 1, 128, 128>}, {transform_indices = @transform_5, window_bounds = array<i64: 1, 128, 128>}]} {
    %c0 = arith.constant 0 : index
    %c0_0 = arith.constant 0 : index
    %c0_1 = arith.constant 0 : index
    %0 = vector.load %arg2[%c0, %c0_0, %c0_1] : memref<1x128x128xf32, #tpu.memory_space<vmem>>, vector<1x128x128xf32>
    %1 = vector.shape_cast %0 : vector<1x128x128xf32> to vector<128x128xf32>
    %2 = arith.truncf %1 : vector<128x128xf32> to vector<128x128xbf16>
    %c0_2 = arith.constant 0 : index
    %c0_3 = arith.constant 0 : index
    %3 = vector.load %arg3[%c0_2, %c0_3] : memref<128x384xbf16, #tpu.memory_space<vmem>>, vector<128x384xbf16>
    %cst = arith.constant dense<0.000000e+00> : vector<128x384xf32>
    %4 = tpu.matmul %2, %3, %cst {dimension_numbers = #tpu.dot_dimension_numbers<[1], [0], [0], [1], [0, 0, 1, 1], [], []>} : vector<128x128xbf16>, vector<128x384xbf16>, vector<128x384xf32> -> vector<128x384xf32>
    %c0_4 = arith.constant 0 : index
    %c0_5 = arith.constant 0 : index
    %5 = vector.load %arg4[%c0_4, %c0_5] : memref<1x384xf32, #tpu.memory_space<vmem>>, vector<1x384xf32>
    %6 = vector.broadcast %5 : vector<1x384xf32> to vector<128x384xf32>
    %7 = arith.addf %4, %6 : vector<128x384xf32>
    %8 = vector.extract_strided_slice %7 {offsets = [0, 0], sizes = [128, 128], strides = [1, 1]} : vector<128x384xf32> to vector<128x128xf32>
    %9 = arith.truncf %8 : vector<128x128xf32> to vector<128x128xbf16>
    %c0_6 = arith.constant 0 : index
    %c0_7 = arith.constant 0 : index
    %c0_8 = arith.constant 0 : index
    %10 = vector.load %arg5[%c0_6, %c0_7, %c0_8] : memref<1x128x128xbf16, #tpu.memory_space<vmem>>, vector<1x128x128xbf16>
    %11 = vector.shape_cast %10 : vector<1x128x128xbf16> to vector<128x128xbf16>
    %12 = vector.shape_cast %9 : vector<128x128xbf16> to vector<1x128x128xbf16>
    tpu.vector_store %arg5[%c0_6, %c0_7, %c0_8], %12 {strides = array<i32>} : memref<1x128x128xbf16, #tpu.memory_space<vmem>>, vector<1x128x128xbf16>,
    %13 = vector.extract_strided_slice %7 {offsets = [0, 128], sizes = [128, 128], strides = [1, 1]} : vector<128x384xf32> to vector<128x128xf32>
    %14 = arith.truncf %13 : vector<128x128xf32> to vector<128x128xbf16>
    %c0_9 = arith.constant 0 : index
    %c0_10 = arith.constant 0 : index
    %c0_11 = arith.constant 0 : index
    %15 = vector.load %arg6[%c0_9, %c0_10, %c0_11] : memref<1x128x128xbf16, #tpu.memory_space<vmem>>, vector<1x128x128xbf16>
    %16 = vector.shape_cast %15 : vector<1x128x128xbf16> to vector<128x128xbf16>
    %17 = vector.shape_cast %14 : vector<128x128xbf16> to vector<1x128x128xbf16>
    tpu.vector_store %arg6[%c0_9, %c0_10, %c0_11], %17 {strides = array<i32>} : memref<1x128x128xbf16, #tpu.memory_space<vmem>>, vector<1x128x128xbf16>,
    %18 = vector.extract_strided_slice %7 {offsets = [0, 256], sizes = [128, 128], strides = [1, 1]} : vector<128x384xf32> to vector<128x128xf32>
    %19 = arith.truncf %18 : vector<128x128xf32> to vector<128x128xbf16>
    %c0_12 = arith.constant 0 : index
    %c0_13 = arith.constant 0 : index
    %c0_14 = arith.constant 0 : index
    %20 = vector.load %arg7[%c0_12, %c0_13, %c0_14] : memref<1x128x128xbf16, #tpu.memory_space<vmem>>, vector<1x128x128xbf16>
    %21 = vector.shape_cast %20 : vector<1x128x128xbf16> to vector<128x128xbf16>
    %22 = vector.shape_cast %19 : vector<128x128xbf16> to vector<1x128x128xbf16>
    tpu.vector_store %arg7[%c0_12, %c0_13, %c0_14], %22 {strides = array<i32>} : memref<1x128x128xbf16, #tpu.memory_space<vmem>>, vector<1x128x128xbf16>,
    return
  }
  func.func @transform_0(%arg0: i32, %arg1: i32) -> (i32, i32, i32) {
    %c0_i32 = arith.constant 0 : i32
    %c0_i32_0 = arith.constant 0 : i32
    return %arg0, %arg1, %c0_i32 : i32, i32, i32
  }
  func.func @transform_1(%arg0: i32, %arg1: i32) -> (i32, i32) {
    %c0_i32 = arith.constant 0 : i32
    %c0_i32_0 = arith.constant 0 : i32
    %c0_i32_1 = arith.constant 0 : i32
    return %c0_i32, %c0_i32_0 : i32, i32
  }
  func.func @transform_2(%arg0: i32, %arg1: i32) -> (i32, i32) {
    %c0_i32 = arith.constant 0 : i32
    %c0_i32_0 = arith.constant 0 : i32
    %c0_i32_1 = arith.constant 0 : i32
    return %c0_i32, %c0_i32_0 : i32, i32
  }
  func.func @transform_3(%arg0: i32, %arg1: i32) -> (i32, i32, i32) {
    %c0_i32 = arith.constant 0 : i32
    %c0_i32_0 = arith.constant 0 : i32
    return %arg0, %arg1, %c0_i32 : i32, i32, i32
  }
  func.func @transform_4(%arg0: i32, %arg1: i32) -> (i32, i32, i32) {
    %c0_i32 = arith.constant 0 : i32
    %c0_i32_0 = arith.constant 0 : i32
    return %arg0, %arg1, %c0_i32 : i32, i32, i32
  }
  func.func @transform_5(%arg0: i32, %arg1: i32) -> (i32, i32, i32) {
    %c0_i32 = arith.constant 0 : i32
    %c0_i32_0 = arith.constant 0 : i32
    return %arg0, %arg1, %c0_i32 : i32, i32, i32
  }
}

module attributes {stable_mosaic.version = 11 : i64} {
  func.func @_flash_attn_out_kernel(%arg0: i32, %arg1: i32, %arg2: i32, %arg3: memref<1x128x128xbf16, #tpu.memory_space<vmem>>, %arg4: memref<1x128x128xbf16, #tpu.memory_space<vmem>>, %arg5: memref<1x128x128xbf16, #tpu.memory_space<vmem>>, %arg6: memref<128x128xbf16, #tpu.memory_space<vmem>>, %arg7: memref<1x128xf32, #tpu.memory_space<vmem>>, %arg8: memref<1x128x128xf32, #tpu.memory_space<vmem>>, %arg9: memref<128x1xf32, #tpu.memory_space<vmem>>, %arg10: memref<128x1xf32, #tpu.memory_space<vmem>>, %arg11: memref<128x128xf32, #tpu.memory_space<vmem>>) attributes {dimension_semantics = [#tpu.dimension_semantics<parallel>, #tpu.dimension_semantics<parallel>, #tpu.dimension_semantics<arbitrary>], iteration_bounds = array<i64: 2, 2, 2>, scalar_prefetch = 0 : i64, scratch_operands = 3 : i64, tpu.core_type = #tpu.core_type<tc>, window_params = [{transform_indices = @transform_0, window_bounds = array<i64: 1, 128, 128>}, {transform_indices = @transform_1, window_bounds = array<i64: 1, 128, 128>}, {transform_indices = @transform_2, window_bounds = array<i64: 1, 128, 128>}, {pipeline_mode = #tpu.pipeline_mode<synchronous>, transform_indices = @transform_3, window_bounds = array<i64: 128, 128>}, {pipeline_mode = #tpu.pipeline_mode<synchronous>, transform_indices = @transform_4, window_bounds = array<i64: 1, 128>}, {transform_indices = @transform_5, window_bounds = array<i64: 1, 128, 128>}]} {
    %c0_i32 = arith.constant 0 : i32
    %0 = arith.cmpi eq, %arg2, %c0_i32 : i32
    %1 = arith.extui %0 : i1 to i32
    %c0_i32_0 = arith.constant 0 : i32
    %2 = arith.cmpi ne, %1, %c0_i32_0 : i32
    scf.if %2 {
      %cst_25 = arith.constant 0xFF800000 : f32
      %36 = vector.broadcast %cst_25 : f32 to vector<128x1xf32>
      %c0_26 = arith.constant 0 : index
      %c0_27 = arith.constant 0 : index
      %37 = vector.load %arg9[%c0_26, %c0_27] : memref<128x1xf32, #tpu.memory_space<vmem>>, vector<128x1xf32>
      tpu.vector_store %arg9[%c0_26, %c0_27], %36 {strides = array<i32>} : memref<128x1xf32, #tpu.memory_space<vmem>>, vector<128x1xf32>,
      %cst_28 = arith.constant 0.000000e+00 : f32
      %38 = vector.broadcast %cst_28 : f32 to vector<128x1xf32>
      %c0_29 = arith.constant 0 : index
      %c0_30 = arith.constant 0 : index
      %39 = vector.load %arg10[%c0_29, %c0_30] : memref<128x1xf32, #tpu.memory_space<vmem>>, vector<128x1xf32>
      tpu.vector_store %arg10[%c0_29, %c0_30], %38 {strides = array<i32>} : memref<128x1xf32, #tpu.memory_space<vmem>>, vector<128x1xf32>,
      %cst_31 = arith.constant 0.000000e+00 : f32
      %40 = vector.broadcast %cst_31 : f32 to vector<128x128xf32>
      %c0_32 = arith.constant 0 : index
      %c0_33 = arith.constant 0 : index
      %41 = vector.load %arg11[%c0_32, %c0_33] : memref<128x128xf32, #tpu.memory_space<vmem>>, vector<128x128xf32>
      tpu.vector_store %arg11[%c0_32, %c0_33], %40 {strides = array<i32>} : memref<128x128xf32, #tpu.memory_space<vmem>>, vector<128x128xf32>,
    } else {
    }
    %c0 = arith.constant 0 : index
    %c0_1 = arith.constant 0 : index
    %c0_2 = arith.constant 0 : index
    %3 = vector.load %arg3[%c0, %c0_1, %c0_2] : memref<1x128x128xbf16, #tpu.memory_space<vmem>>, vector<1x128x128xbf16>
    %4 = vector.shape_cast %3 : vector<1x128x128xbf16> to vector<128x128xbf16>
    %c0_3 = arith.constant 0 : index
    %c0_4 = arith.constant 0 : index
    %c0_5 = arith.constant 0 : index
    %5 = vector.load %arg4[%c0_3, %c0_4, %c0_5] : memref<1x128x128xbf16, #tpu.memory_space<vmem>>, vector<1x128x128xbf16>
    %6 = vector.shape_cast %5 : vector<1x128x128xbf16> to vector<128x128xbf16>
    %cst = arith.constant dense<0.000000e+00> : vector<128x128xf32>
    %7 = tpu.matmul %4, %6, %cst {dimension_numbers = #tpu.dot_dimension_numbers<[1], [1], [0], [0], [0, 0, 1, 0], [], []>} : vector<128x128xbf16>, vector<128x128xbf16>, vector<128x128xf32> -> vector<128x128xf32>
    %c0_6 = arith.constant 0 : index
    %c0_7 = arith.constant 0 : index
    %8 = vector.load %arg9[%c0_6, %c0_7] : memref<128x1xf32, #tpu.memory_space<vmem>>, vector<128x1xf32>
    %cst_8 = arith.constant dense<0xFF800000> : vector<128xf32>
    %9 = vector.multi_reduction <maximumf>, %7, %cst_8 [1] : vector<128x128xf32> to vector<128xf32>
    %10 = vector.shape_cast %9 : vector<128xf32> to vector<128x1xf32>
    %11 = arith.maximumf %8, %10 : vector<128x1xf32>
    %12 = arith.subf %8, %11 : vector<128x1xf32>
    %13 = math.exp %12 : vector<128x1xf32>
    %14 = vector.broadcast %11 : vector<128x1xf32> to vector<128x128xf32>
    %15 = arith.subf %7, %14 : vector<128x128xf32>
    %16 = math.exp %15 : vector<128x128xf32>
    %c0_9 = arith.constant 0 : index
    %c0_10 = arith.constant 0 : index
    %17 = vector.load %arg10[%c0_9, %c0_10] : memref<128x1xf32, #tpu.memory_space<vmem>>, vector<128x1xf32>
    %18 = arith.mulf %13, %17 : vector<128x1xf32>
    %cst_11 = arith.constant dense<0.000000e+00> : vector<128xf32>
    %19 = vector.multi_reduction <add>, %16, %cst_11 [1] : vector<128x128xf32> to vector<128xf32>
    %20 = vector.shape_cast %19 : vector<128xf32> to vector<128x1xf32>
    %21 = arith.addf %18, %20 : vector<128x1xf32>
    %c0_12 = arith.constant 0 : index
    %c0_13 = arith.constant 0 : index
    %22 = vector.load %arg10[%c0_12, %c0_13] : memref<128x1xf32, #tpu.memory_space<vmem>>, vector<128x1xf32>
    tpu.vector_store %arg10[%c0_12, %c0_13], %21 {strides = array<i32>} : memref<128x1xf32, #tpu.memory_space<vmem>>, vector<128x1xf32>,
    %c0_14 = arith.constant 0 : index
    %c0_15 = arith.constant 0 : index
    %23 = vector.load %arg11[%c0_14, %c0_15] : memref<128x128xf32, #tpu.memory_space<vmem>>, vector<128x128xf32>
    %24 = vector.broadcast %13 : vector<128x1xf32> to vector<128x128xf32>
    %25 = arith.mulf %24, %23 : vector<128x128xf32>
    %26 = arith.truncf %16 : vector<128x128xf32> to vector<128x128xbf16>
    %c0_16 = arith.constant 0 : index
    %c0_17 = arith.constant 0 : index
    %c0_18 = arith.constant 0 : index
    %27 = vector.load %arg5[%c0_16, %c0_17, %c0_18] : memref<1x128x128xbf16, #tpu.memory_space<vmem>>, vector<1x128x128xbf16>
    %28 = vector.shape_cast %27 : vector<1x128x128xbf16> to vector<128x128xbf16>
    %cst_19 = arith.constant dense<0.000000e+00> : vector<128x128xf32>
    %29 = tpu.matmul %26, %28, %cst_19 {dimension_numbers = #tpu.dot_dimension_numbers<[1], [0], [0], [1], [0, 0, 1, 1], [], []>} : vector<128x128xbf16>, vector<128x128xbf16>, vector<128x128xf32> -> vector<128x128xf32>
    %30 = arith.addf %25, %29 : vector<128x128xf32>
    %c0_20 = arith.constant 0 : index
    %c0_21 = arith.constant 0 : index
    %31 = vector.load %arg11[%c0_20, %c0_21] : memref<128x128xf32, #tpu.memory_space<vmem>>, vector<128x128xf32>
    tpu.vector_store %arg11[%c0_20, %c0_21], %30 {strides = array<i32>} : memref<128x128xf32, #tpu.memory_space<vmem>>, vector<128x128xf32>,
    %c0_22 = arith.constant 0 : index
    %c0_23 = arith.constant 0 : index
    %32 = vector.load %arg9[%c0_22, %c0_23] : memref<128x1xf32, #tpu.memory_space<vmem>>, vector<128x1xf32>
    tpu.vector_store %arg9[%c0_22, %c0_23], %11 {strides = array<i32>} : memref<128x1xf32, #tpu.memory_space<vmem>>, vector<128x1xf32>,
    %c1_i32 = arith.constant 1 : i32
    %33 = arith.cmpi eq, %arg2, %c1_i32 : i32
    %34 = arith.extui %33 : i1 to i32
    %c0_i32_24 = arith.constant 0 : i32
    %35 = arith.cmpi ne, %34, %c0_i32_24 : i32
    scf.if %35 {
      %c0_25 = arith.constant 0 : index
      %c0_26 = arith.constant 0 : index
      %36 = vector.load %arg11[%c0_25, %c0_26] : memref<128x128xf32, #tpu.memory_space<vmem>>, vector<128x128xf32>
      %c0_27 = arith.constant 0 : index
      %c0_28 = arith.constant 0 : index
      %37 = vector.load %arg10[%c0_27, %c0_28] : memref<128x1xf32, #tpu.memory_space<vmem>>, vector<128x1xf32>
      %38 = tpu.reciprocal %37 {approx = true} : vector<128x1xf32> -> vector<128x1xf32>
      %39 = vector.broadcast %38 : vector<128x1xf32> to vector<128x128xf32>
      %40 = arith.mulf %36, %39 : vector<128x128xf32>
      %41 = arith.truncf %40 : vector<128x128xf32> to vector<128x128xbf16>
      %c0_29 = arith.constant 0 : index
      %c0_30 = arith.constant 0 : index
      %42 = vector.load %arg6[%c0_29, %c0_30] : memref<128x128xbf16, #tpu.memory_space<vmem>>, vector<128x128xbf16>
      %cst_31 = arith.constant dense<0.000000e+00> : vector<128x128xf32>
      %43 = tpu.matmul %41, %42, %cst_31 {dimension_numbers = #tpu.dot_dimension_numbers<[1], [0], [0], [1], [0, 0, 1, 1], [], []>} : vector<128x128xbf16>, vector<128x128xbf16>, vector<128x128xf32> -> vector<128x128xf32>
      %c0_32 = arith.constant 0 : index
      %c0_33 = arith.constant 0 : index
      %44 = vector.load %arg7[%c0_32, %c0_33] : memref<1x128xf32, #tpu.memory_space<vmem>>, vector<1x128xf32>
      %45 = vector.broadcast %44 : vector<1x128xf32> to vector<128x128xf32>
      %46 = arith.addf %43, %45 : vector<128x128xf32>
      %c0_34 = arith.constant 0 : index
      %c0_35 = arith.constant 0 : index
      %c0_36 = arith.constant 0 : index
      %47 = vector.load %arg8[%c0_34, %c0_35, %c0_36] : memref<1x128x128xf32, #tpu.memory_space<vmem>>, vector<1x128x128xf32>
      %48 = vector.shape_cast %47 : vector<1x128x128xf32> to vector<128x128xf32>
      %49 = vector.shape_cast %46 : vector<128x128xf32> to vector<1x128x128xf32>
      tpu.vector_store %arg8[%c0_34, %c0_35, %c0_36], %49 {strides = array<i32>} : memref<1x128x128xf32, #tpu.memory_space<vmem>>, vector<1x128x128xf32>,
    } else {
    }
    return
  }
  func.func @transform_0(%arg0: i32, %arg1: i32, %arg2: i32) -> (i32, i32, i32) {
    %c0_i32 = arith.constant 0 : i32
    %c0_i32_0 = arith.constant 0 : i32
    return %arg0, %arg1, %c0_i32 : i32, i32, i32
  }
  func.func @transform_1(%arg0: i32, %arg1: i32, %arg2: i32) -> (i32, i32, i32) {
    %c0_i32 = arith.constant 0 : i32
    %c0_i32_0 = arith.constant 0 : i32
    return %arg0, %arg2, %c0_i32 : i32, i32, i32
  }
  func.func @transform_2(%arg0: i32, %arg1: i32, %arg2: i32) -> (i32, i32, i32) {
    %c0_i32 = arith.constant 0 : i32
    %c0_i32_0 = arith.constant 0 : i32
    return %arg0, %arg2, %c0_i32 : i32, i32, i32
  }
  func.func @transform_3(%arg0: i32, %arg1: i32, %arg2: i32) -> (i32, i32) {
    %c0_i32 = arith.constant 0 : i32
    %c0_i32_0 = arith.constant 0 : i32
    %c0_i32_1 = arith.constant 0 : i32
    return %c0_i32, %c0_i32_0 : i32, i32
  }
  func.func @transform_4(%arg0: i32, %arg1: i32, %arg2: i32) -> (i32, i32) {
    %c0_i32 = arith.constant 0 : i32
    %c0_i32_0 = arith.constant 0 : i32
    %c0_i32_1 = arith.constant 0 : i32
    return %c0_i32, %c0_i32_0 : i32, i32
  }
  func.func @transform_5(%arg0: i32, %arg1: i32, %arg2: i32) -> (i32, i32, i32) {
    %c0_i32 = arith.constant 0 : i32
    %c0_i32_0 = arith.constant 0 : i32
    return %arg0, %arg1, %c0_i32 : i32, i32, i32
  }
}

</mosaic_0001>

<llo_original>
// kernel: xformers_attention_pallas.2
$region0: #{xformers_attention_pallas.2}
  #allocation0 [shape = 'u32[]', space=smem, size = 0x4, offset = 0x4, fixed_abs, tag = 'smem constant byte address 0x4 - core index']
  #allocation1 [shape = 'u32[144,128]{1,0:T(1,128)}', space=vmem, size = 0x12000, scoped, tag = 'internal scratch']
  %s0 = inlined_call_operand.vmem [shape: f32[2,256,128], index: 0, kind: input, shape index: {}]
  %s1 = inlined_call_operand.vmem [shape: bf16[128,384], index: 1, kind: input, shape index: {}]
  %s2 = inlined_call_operand.vmem [shape: f32[1,384], index: 2, kind: input, shape index: {}]
  %s3 = inlined_call_operand.vmem [shape: bf16[2,256,128], index: 3, kind: output, shape index: {0}]
  %s4 = inlined_call_operand.vmem [shape: bf16[2,256,128], index: 4, kind: output, shape index: {1}]
  %s5 = inlined_call_operand.vmem [shape: bf16[2,256,128], index: 5, kind: output, shape index: {2}]
  %6 = xla_tuple %s3, %s4, %s5
  %s7 = sld [smem:[#allocation0]]
  $region61: #{xformers_attention_pallas.2} parent=0
    _
  %s9 = ssub.s32 1, %s7
  %s10 = scalar_select 0, %s9, %s7
  loop: start=0, step=1, limit=6
  $region2: #{xformers_attention_pallas.2} parent=0 // loop_pre_header
    _
  $region3: #{xformers_attention_pallas.2} parent=0 // loop_header
    %s12 = sphi 0, %s16
    %p13 = scmp.ge.s32.totalorder %s12, 6
    %s19 = sphi 0, %s31
    %s20 = sphi 0, %s27
    %s21 = sphi 0, %s19
    %s22 = sphi 0, %s20
    %s23 = sphi 0, %s21
    %s24 = sphi 0, %s22
    %s36 = sphi 0, %s38
    %s39 = sphi 0, %s36
    %s40 = sphi 0, %s39
    %s56 = sphi 0, %s40
    %s60 = sphi 0, %s60
    %s62 = sphi 0, %s60
    %s63 = sphi 0, %s62
    %s77 = sphi 0, %s63
    %s81 = sphi 0, %s81
    %s83 = sphi 0, %s81
    %s84 = sphi 0, %s83
    %s98 = sphi 0, %s84
    %s106 = sphi 0, %s108
    %s109 = sphi 0, %s106
    %s110 = sphi 0, %s109
    %s126 = sphi 0, %s110
    %s134 = sphi 0, %s136
    %s137 = sphi 0, %s134
    %s138 = sphi 0, %s137
    %s154 = sphi 0, %s138
    %s162 = sphi 0, %s164
    %s165 = sphi 0, %s162
    %s166 = sphi 0, %s165
    %s182 = sphi 0, %s166
  $region4: #{xformers_attention_pallas.2} parent=0 // loop_header_branch
    %15 = sbr.rel (%p13) target = $region8
  $region5: #{xformers_attention_pallas.2} parent=0 // loop_body
    %s17 = ssub.s32 %s12, 1
    %s18 = ssub.s32 %s12, 2
    %s25 = sadd.s32 1, %s20
    %p26 = scmp.ge.s32.totalorder %s25, 2
    %s27 = scalar_select %p26, 0, %s25
    %s28 = sadd.s32 1, %s19
    %s29 = scalar_select %p26, %s28, %s19
    %p30 = scmp.ge.s32.totalorder %s29, 2
    %s31 = scalar_select %p30, 0, %s29
    %s32 = ssub.s32 %s19, %s31
    %s33 = ssub.s32 %s20, %s27
    %s34 = sor.u32 %s32, %s33
    %p35 = scmp.eq.s32.totalorder %s34, 0
    %s37 = sadd.s32 %s36, 1
    %s38 = scalar_select %p35, %s36, %s37
    %p41 = pneg %p35
    %p42 = scmp.eq.s32.totalorder %s12, 3
    %p43 = por %p41, %p42
    %p44 = scmp.ne.s32.totalorder %s36, %s39
    %p45 = scmp.eq.s32.totalorder %s12, 0
    %p46 = por %p44, %p45
    %p47 = scmp.ne.s32.totalorder %s36, %s39
    %p48 = scmp.eq.s32.totalorder %s17, 3
    %p49 = por %p47, %p48
    %p50 = scmp.ne.s32.totalorder %s39, %s40
    %p51 = scmp.eq.s32.totalorder %s17, 0
    %p52 = por %p50, %p51
    %p53 = scmp.ne.s32.totalorder %s39, %s40
    %p54 = scmp.eq.s32.totalorder %s18, 3
    %p55 = por %p53, %p54
    %p57 = scmp.ne.s32.totalorder %s40, %s56
    %p58 = scmp.eq.s32.totalorder %s18, 0
    %p59 = por %p57, %p58
    %s61 = sadd.s32 %s60, 1
    %p64 = scmp.eq.s32.totalorder %s12, 3
    %p65 = scmp.ne.s32.totalorder %s60, %s62
    %p66 = scmp.eq.s32.totalorder %s12, 0
    %p67 = por %p65, %p66
    %p68 = scmp.ne.s32.totalorder %s60, %s62
    %p69 = scmp.eq.s32.totalorder %s17, 3
    %p70 = por %p68, %p69
    %p71 = scmp.ne.s32.totalorder %s62, %s63
    %p72 = scmp.eq.s32.totalorder %s17, 0
    %p73 = por %p71, %p72
    %p74 = scmp.ne.s32.totalorder %s62, %s63
    %p75 = scmp.eq.s32.totalorder %s18, 3
    %p76 = por %p74, %p75
    %p78 = scmp.ne.s32.totalorder %s63, %s77
    %p79 = scmp.eq.s32.totalorder %s18, 0
    %p80 = por %p78, %p79
    %s82 = sadd.s32 %s81, 1
    %p85 = scmp.eq.s32.totalorder %s12, 3
    %p86 = scmp.ne.s32.totalorder %s81, %s83
    %p87 = scmp.eq.s32.totalorder %s12, 0
    %p88 = por %p86, %p87
    %p89 = scmp.ne.s32.totalorder %s81, %s83
    %p90 = scmp.eq.s32.totalorder %s17, 3
    %p91 = por %p89, %p90
    %p92 = scmp.ne.s32.totalorder %s83, %s84
    %p93 = scmp.eq.s32.totalorder %s17, 0
    %p94 = por %p92, %p93
    %p95 = scmp.ne.s32.totalorder %s83, %s84
    %p96 = scmp.eq.s32.totalorder %s18, 3
    %p97 = por %p95, %p96
    %p99 = scmp.ne.s32.totalorder %s84, %s98
    %p100 = scmp.eq.s32.totalorder %s18, 0
    %p101 = por %p99, %p100
    %s102 = ssub.s32 %s19, %s31
    %s103 = ssub.s32 %s20, %s27
    %s104 = sor.u32 %s102, %s103
    %p105 = scmp.eq.s32.totalorder %s104, 0
    %s107 = sadd.s32 %s106, 1
    %s108 = scalar_select %p105, %s106, %s107
    %p111 = pneg %p105
    %p112 = scmp.eq.s32.totalorder %s12, 3
    %p113 = por %p111, %p112
    %p114 = scmp.ne.s32.totalorder %s106, %s109
    %p115 = scmp.eq.s32.totalorder %s12, 0
    %p116 = por %p114, %p115
    %p117 = scmp.ne.s32.totalorder %s106, %s109
    %p118 = scmp.eq.s32.totalorder %s17, 3
    %p119 = por %p117, %p118
    %p120 = scmp.ne.s32.totalorder %s109, %s110
    %p121 = scmp.eq.s32.totalorder %s17, 0
    %p122 = por %p120, %p121
    %p123 = scmp.ne.s32.totalorder %s109, %s110
    %p124 = scmp.eq.s32.totalorder %s18, 3
    %p125 = por %p123, %p124
    %p127 = scmp.ne.s32.totalorder %s110, %s126
    %p128 = scmp.eq.s32.totalorder %s18, 0
    %p129 = por %p127, %p128
    %s130 = ssub.s32 %s19, %s31
    %s131 = ssub.s32 %s20, %s27
    %s132 = sor.u32 %s130, %s131
    %p133 = scmp.eq.s32.totalorder %s132, 0
    %s135 = sadd.s32 %s134, 1
    %s136 = scalar_select %p133, %s134, %s135
    %p139 = pneg %p133
    %p140 = scmp.eq.s32.totalorder %s12, 3
    %p141 = por %p139, %p140
    %p142 = scmp.ne.s32.totalorder %s134, %s137
    %p143 = scmp.eq.s32.totalorder %s12, 0
    %p144 = por %p142, %p143
    %p145 = scmp.ne.s32.totalorder %s134, %s137
    %p146 = scmp.eq.s32.totalorder %s17, 3
    %p147 = por %p145, %p146
    %p148 = scmp.ne.s32.totalorder %s137, %s138
    %p149 = scmp.eq.s32.totalorder %s17, 0
    %p150 = por %p148, %p149
    %p151 = scmp.ne.s32.totalorder %s137, %s138
    %p152 = scmp.eq.s32.totalorder %s18, 3
    %p153 = por %p151, %p152
    %p155 = scmp.ne.s32.totalorder %s138, %s154
    %p156 = scmp.eq.s32.totalorder %s18, 0
    %p157 = por %p155, %p156
    %s158 = ssub.s32 %s19, %s31
    %s159 = ssub.s32 %s20, %s27
    %s160 = sor.u32 %s158, %s159
    %p161 = scmp.eq.s32.totalorder %s160, 0
    %s163 = sadd.s32 %s162, 1
    %s164 = scalar_select %p161, %s162, %s163
    %p167 = pneg %p161
    %p168 = scmp.eq.s32.totalorder %s12, 3
    %p169 = por %p167, %p168
    %p170 = scmp.ne.s32.totalorder %s162, %s165
    %p171 = scmp.eq.s32.totalorder %s12, 0
    %p172 = por %p170, %p171
    %p173 = scmp.ne.s32.totalorder %s162, %s165
    %p174 = scmp.eq.s32.totalorder %s17, 3
    %p175 = por %p173, %p174
    %p176 = scmp.ne.s32.totalorder %s165, %s166
    %p177 = scmp.eq.s32.totalorder %s17, 0
    %p178 = por %p176, %p177
    %p179 = scmp.ne.s32.totalorder %s165, %s166
    %p180 = scmp.eq.s32.totalorder %s18, 3
    %p181 = por %p179, %p180
    %p183 = scmp.ne.s32.totalorder %s166, %s182
    %p184 = scmp.eq.s32.totalorder %s18, 0
    %p185 = por %p183, %p184
    %p186 = scmp.le.s32.totalorder 1, %s12
    %p187 = scmp.lt.s32.totalorder %s12, 5
    %p188 = pnand %p186, %p187
    %p189 = pneg %p188
    // Predicated region
    $region9: #{xformers_attention_pallas.2} parent=5 // pred_check
      _
    $region10: #{xformers_attention_pallas.2} parent=5 // pred_check_branch
      %191 = sbr.rel (%p188) target = $region12
    $region11: #{xformers_attention_pallas.2} parent=5 // pred_region
      %s192 = ssub.s32 %s12, 1
      // Predicated region
      $region13: #{xformers_attention_pallas.2} parent=11 // pred_check
        %p193 = pneg %p73
      $region14: #{xformers_attention_pallas.2} parent=11 // pred_check_branch
        %195 = sbr.rel (%p193) target = $region16
      $region15: #{xformers_attention_pallas.2} parent=11 // pred_region
        _
      $region16: #{xformers_attention_pallas.2} parent=11 // pred_fallthru
        _
      // Predicated region
      $region17: #{xformers_attention_pallas.2} parent=11 // pred_check
        %p196 = pneg %p94
      $region18: #{xformers_attention_pallas.2} parent=11 // pred_check_branch
        %198 = sbr.rel (%p196) target = $region20
      $region19: #{xformers_attention_pallas.2} parent=11 // pred_region
        _
      $region20: #{xformers_attention_pallas.2} parent=11 // pred_fallthru
        _
    $region12: #{xformers_attention_pallas.2} parent=5 // pred_fallthru
      _
    %p199 = scmp.lt.s32.totalorder %s12, 4
    // Predicated region
    $region21: #{xformers_attention_pallas.2} parent=5 // pred_check
      %p200 = pneg %p199
    $region22: #{xformers_attention_pallas.2} parent=5 // pred_check_branch
      %202 = sbr.rel (%p200) target = $region24
    $region23: #{xformers_attention_pallas.2} parent=5 // pred_region
      // Predicated region
      $region25: #{xformers_attention_pallas.2} parent=23 // pred_check
        %p203 = pneg %p46
      $region26: #{xformers_attention_pallas.2} parent=23 // pred_check_branch
        %205 = sbr.rel (%p203) target = $region28
      $region27: #{xformers_attention_pallas.2} parent=23 // pred_region
        %s206 = smul.u32 16, %s20
        %p207 = scmp.lt.s32.totalorder %s19, 1
        %s208 = scalar_select %p207, %s19, 1
        %p209 = scmp.lt.s32.totalorder %s206, 31
        %s210 = scalar_select %p209, %s206, 31
        %s211 = smul.addr %s208, 32
        %s212 = sadd.s32 %s210, %s211
        %s213 = smul.addr %s212, 8
        %s214 = scalar_lea.vmem %s0, %s213
        %s215 = smul.u32 16, %s20
      $region28: #{xformers_attention_pallas.2} parent=23 // pred_fallthru
        _
    $region24: #{xformers_attention_pallas.2} parent=5 // pred_fallthru
      _
    %p216 = scmp.le.s32.totalorder 1, %s12
    %p217 = scmp.lt.s32.totalorder %s12, 5
    %p218 = pnand %p216, %p217
    %p219 = pneg %p218
    // Predicated region
    $region29: #{xformers_attention_pallas.2} parent=5 // pred_check
      _
    $region30: #{xformers_attention_pallas.2} parent=5 // pred_check_branch
      %221 = sbr.rel (%p218) target = $region32
    $region31: #{xformers_attention_pallas.2} parent=5 // pred_region
      %s222 = ssub.s32 %s12, 1
      %s223 = smul.u32 16, %s22
      %p224 = scmp.lt.s32.totalorder %s21, 1
      %s225 = scalar_select %p224, %s21, 1
      %p226 = scmp.lt.s32.totalorder %s223, 31
      %s227 = scalar_select %p226, %s223, 31
      %s228 = smul.addr %s225, 32
      %s229 = sadd.s32 %s227, %s228
      %s230 = smul.addr %s229, 8
      %s231 = scalar_lea.vmem %s0, %s230
      %p232 = pneg %p52
      %p233 = pneg %p49
      %p234 = pneg %p73
      %p235 = pneg %p70
      %p236 = pneg %p94
      %p237 = pneg %p91
      %p238 = pneg %p122
      %p239 = pneg %p119
      %s240 = smul.u32 16, %s22
      %p241 = scmp.lt.s32.totalorder %s21, 1
      %s242 = scalar_select %p241, %s21, 1
      %p243 = scmp.lt.s32.totalorder %s240, 31
      %s244 = scalar_select %p243, %s240, 31
      %s245 = smul.addr %s242, 32
      %s246 = sadd.s32 %s244, %s245
      %s247 = smul.addr %s246, 4
      %s248 = scalar_lea.vmem %s3, %s247
      %p249 = pneg %p150
      %p250 = pneg %p147
      %s251 = smul.u32 16, %s22
      %p252 = scmp.lt.s32.totalorder %s21, 1
      %s253 = scalar_select %p252, %s21, 1
      %p254 = scmp.lt.s32.totalorder %s251, 31
      %s255 = scalar_select %p254, %s251, 31
      %s256 = smul.addr %s253, 32
      %s257 = sadd.s32 %s255, %s256
      %s258 = smul.addr %s257, 4
      %s259 = scalar_lea.vmem %s4, %s258
      %p260 = pneg %p178
      %p261 = pneg %p175
      %s262 = smul.u32 16, %s22
      %p263 = scmp.lt.s32.totalorder %s21, 1
      %s264 = scalar_select %p263, %s21, 1
      %p265 = scmp.lt.s32.totalorder %s262, 31
      %s266 = scalar_select %p265, %s262, 31
      %s267 = smul.addr %s264, 32
      %s268 = sadd.s32 %s266, %s267
      %s269 = smul.addr %s268, 4
      %s270 = scalar_lea.vmem %s5, %s269
      %s271 = smul.u32 16, %s22
      %p272 = scmp.lt.s32.totalorder %s21, 1
      %s273 = scalar_select %p272, %s21, 1
      %p274 = scmp.lt.s32.totalorder %s271, 31
      %s275 = scalar_select %p274, %s271, 31
      %s276 = smul.addr %s273, 32
      %s277 = sadd.s32 %s275, %s276
      %s278 = smul.addr %s277, 8
      %s279 = scalar_lea.vmem %s0, %s278
      %s280 = smul.u32 16, %s22
      %s281 = smul.u32 16, %s22
      %p282 = scmp.lt.s32.totalorder %s21, 1
      %s283 = scalar_select %p282, %s21, 1
      %p284 = scmp.lt.s32.totalorder %s281, 31
      %s285 = scalar_select %p284, %s281, 31
      %s286 = smul.addr %s283, 32
      %s287 = sadd.s32 %s285, %s286
      %s288 = smul.addr %s287, 4
      %s289 = scalar_lea.vmem %s3, %s288
      %s290 = smul.u32 16, %s22
      %s291 = smul.u32 16, %s22
      %p292 = scmp.lt.s32.totalorder %s21, 1
      %s293 = scalar_select %p292, %s21, 1
      %p294 = scmp.lt.s32.totalorder %s291, 31
      %s295 = scalar_select %p294, %s291, 31
      %s296 = smul.addr %s293, 32
      %s297 = sadd.s32 %s295, %s296
      %s298 = smul.addr %s297, 4
      %s299 = scalar_lea.vmem %s4, %s298
      %s300 = smul.u32 16, %s22
      %s301 = smul.u32 16, %s22
      %p302 = scmp.lt.s32.totalorder %s21, 1
      %s303 = scalar_select %p302, %s21, 1
      %p304 = scmp.lt.s32.totalorder %s301, 31
      %s305 = scalar_select %p304, %s301, 31
      %s306 = smul.addr %s303, 32
      %s307 = sadd.s32 %s305, %s306
      %s308 = smul.addr %s307, 4
      %s309 = scalar_lea.vmem %s5, %s308
      %s310 = smul.u32 16, %s22
      %v312 = vld [vmem:[%s279] sm:$0xff]
      %v313 = vld [vmem:[%s279 + $0x8] sm:$0xff]
      %v314 = vld [vmem:[%s279 + $0x10] sm:$0xff]
      %v315 = vld [vmem:[%s279 + $0x18] sm:$0xff]
      %v316 = vld [vmem:[%s279 + $0x20] sm:$0xff]
      %v317 = vld [vmem:[%s279 + $0x28] sm:$0xff]
      %v318 = vld [vmem:[%s279 + $0x30] sm:$0xff]
      %v319 = vld [vmem:[%s279 + $0x38] sm:$0xff]
      %v320 = vld [vmem:[%s279 + $0x40] sm:$0xff]
      %v321 = vld [vmem:[%s279 + $0x48] sm:$0xff]
      %v322 = vld [vmem:[%s279 + $0x50] sm:$0xff]
      %v323 = vld [vmem:[%s279 + $0x58] sm:$0xff]
      %v324 = vld [vmem:[%s279 + $0x60] sm:$0xff]
      %v325 = vld [vmem:[%s279 + $0x68] sm:$0xff]
      %v326 = vld [vmem:[%s279 + $0x70] sm:$0xff]
      %v327 = vld [vmem:[%s279 + $0x78] sm:$0xff]
      %v328 = vpack.c.bf16 %v313, %v312
      %v329 = vpack.c.bf16 %v315, %v314
      %v330 = vpack.c.bf16 %v317, %v316
      %v331 = vpack.c.bf16 %v319, %v318
      %v332 = vpack.c.bf16 %v321, %v320
      %v333 = vpack.c.bf16 %v323, %v322
      %v334 = vpack.c.bf16 %v325, %v324
      %v335 = vpack.c.bf16 %v327, %v326
      %v336 = vld [vmem:[%s1] sm:$0xff]
      %v337 = vld [vmem:[%s1 + $0x8] sm:$0xf]
      %v338 = vld [vmem:[%s1 + $0xc] sm:$0xff]
      %v339 = vld [vmem:[%s1 + $0x14] sm:$0xf]
      %v340 = vld [vmem:[%s1 + $0x18] sm:$0xff]
      %v341 = vld [vmem:[%s1 + $0x20] sm:$0xf]
      %v342 = vld [vmem:[%s1 + $0x24] sm:$0xff]
      %v343 = vld [vmem:[%s1 + $0x2c] sm:$0xf]
      %v344 = vld [vmem:[%s1 + $0x30] sm:$0xff]
      %v345 = vld [vmem:[%s1 + $0x38] sm:$0xf]
      %v346 = vld [vmem:[%s1 + $0x3c] sm:$0xff]
      %v347 = vld [vmem:[%s1 + $0x44] sm:$0xf]
      %v348 = vld [vmem:[%s1 + $0x48] sm:$0xff]
      %v349 = vld [vmem:[%s1 + $0x50] sm:$0xf]
      %v350 = vld [vmem:[%s1 + $0x54] sm:$0xff]
      %v351 = vld [vmem:[%s1 + $0x5c] sm:$0xf]
      %v352 = vld [vmem:[%s1 + $0x60] sm:$0xff]
      %v353 = vld [vmem:[%s1 + $0x68] sm:$0xf]
      %v354 = vld [vmem:[%s1 + $0x6c] sm:$0xff]
      %v355 = vld [vmem:[%s1 + $0x74] sm:$0xf]
      %v356 = vld [vmem:[%s1 + $0x78] sm:$0xff]
      %v357 = vld [vmem:[%s1 + $0x80] sm:$0xf]
      %v358 = vld [vmem:[%s1 + $0x84] sm:$0xff]
      %v359 = vld [vmem:[%s1 + $0x8c] sm:$0xf]
      %v360 = vld [vmem:[%s1 + $0x90] sm:$0xff]
      %v361 = vld [vmem:[%s1 + $0x98] sm:$0xf]
      %v362 = vld [vmem:[%s1 + $0x9c] sm:$0xff]
      %v363 = vld [vmem:[%s1 + $0xa4] sm:$0xf]
      %v364 = vld [vmem:[%s1 + $0xa8] sm:$0xff]
      %v365 = vld [vmem:[%s1 + $0xb0] sm:$0xf]
      %v366 = vld [vmem:[%s1 + $0xb4] sm:$0xff]
      %v367 = vld [vmem:[%s1 + $0xbc] sm:$0xf]
      %v368 = vld [vmem:[%s2] sm:$0x7]
      %v370 = vlaneseq
      %v371 = vshrl.u32 %v370, 7
      %v372 = vsub.s32 0, %v371
      %v373 = vrot.slane %v368, %v372
      %v374 = vlaneseq
      %v375 = vshrl.u32 %v374, 7
      %v376 = vsub.s32 1, %v375
      %v377 = vrot.slane %v368, %v376
      %v378 = vlaneseq
      %v379 = vshrl.u32 %v378, 7
      %v380 = vsub.s32 2, %v379
      %v381 = vrot.slane %v368, %v380
      %v417 = vunpack.c.l.b16 %v336
      %v418 = vunpack.c.h.b16 %v336
      %v419 = vunpack.c.l.b16 %v337
      %v420 = vunpack.c.l.b16 %v338
      %v421 = vunpack.c.h.b16 %v338
      %v422 = vunpack.c.l.b16 %v339
      %v423 = vunpack.c.l.b16 %v340
      %v424 = vunpack.c.h.b16 %v340
      %v425 = vunpack.c.l.b16 %v341
      %v426 = vunpack.c.l.b16 %v342
      %v427 = vunpack.c.h.b16 %v342
      %v428 = vunpack.c.l.b16 %v343
      %v429 = vunpack.c.l.b16 %v344
      %v430 = vunpack.c.h.b16 %v344
      %v431 = vunpack.c.l.b16 %v345
      %v432 = vunpack.c.l.b16 %v346
      %v433 = vunpack.c.h.b16 %v346
      %v434 = vunpack.c.l.b16 %v347
      %v435 = vunpack.c.l.b16 %v348
      %v436 = vunpack.c.h.b16 %v348
      %v437 = vunpack.c.l.b16 %v349
      %v438 = vunpack.c.l.b16 %v350
      %v439 = vunpack.c.h.b16 %v350
      %v440 = vunpack.c.l.b16 %v351
      %v441 = vunpack.c.l.b16 %v352
      %v442 = vunpack.c.h.b16 %v352
      %v443 = vunpack.c.l.b16 %v353
      %v444 = vunpack.c.l.b16 %v354
      %v445 = vunpack.c.h.b16 %v354
      %v446 = vunpack.c.l.b16 %v355
      %v447 = vunpack.c.l.b16 %v356
      %v448 = vunpack.c.h.b16 %v356
      %v449 = vunpack.c.l.b16 %v357
      %v450 = vunpack.c.l.b16 %v358
      %v451 = vunpack.c.h.b16 %v358
      %v452 = vunpack.c.l.b16 %v359
      %v453 = vunpack.c.l.b16 %v360
      %v454 = vunpack.c.h.b16 %v360
      %v455 = vunpack.c.l.b16 %v361
      %v456 = vunpack.c.l.b16 %v362
      %v457 = vunpack.c.h.b16 %v362
      %v458 = vunpack.c.l.b16 %v363
      %v459 = vunpack.c.l.b16 %v364
      %v460 = vunpack.c.h.b16 %v364
      %v461 = vunpack.c.l.b16 %v365
      %v462 = vunpack.c.l.b16 %v366
      %v463 = vunpack.c.h.b16 %v366
      %v464 = vunpack.c.l.b16 %v367
      %v465 = vpack.c.b16 %v420, %v417
      %v466 = vpack.c.b16 %v421, %v418
      %v467 = vpack.c.b16 %v422, %v419
      %v468 = vpack.c.b16 %v426, %v423
      %v469 = vpack.c.b16 %v427, %v424
      %v470 = vpack.c.b16 %v428, %v425
      %v471 = vpack.c.b16 %v432, %v429
      %v472 = vpack.c.b16 %v433, %v430
      %v473 = vpack.c.b16 %v434, %v431
      %v474 = vpack.c.b16 %v438, %v435
      %v475 = vpack.c.b16 %v439, %v436
      %v476 = vpack.c.b16 %v440, %v437
      %v477 = vpack.c.b16 %v444, %v441
      %v478 = vpack.c.b16 %v445, %v442
      %v479 = vpack.c.b16 %v446, %v443
      %v480 = vpack.c.b16 %v450, %v447
      %v481 = vpack.c.b16 %v451, %v448
      %v482 = vpack.c.b16 %v452, %v449
      %v483 = vpack.c.b16 %v456, %v453
      %v484 = vpack.c.b16 %v457, %v454
      %v485 = vpack.c.b16 %v458, %v455
      %v486 = vpack.c.b16 %v462, %v459
      %v487 = vpack.c.b16 %v463, %v460
      %v488 = vpack.c.b16 %v464, %v461
      %513 = vmatprep.subr.bf16.mxu0 %v466
      %514 = vmatpush1.bf16.msra.mxu0 %v465
      %515 = vmatprep.subr.bf16.mxu0 %v469
      %516 = vmatpush1.bf16.msra.mxu0 %v468
      %517 = vmatprep.subr.bf16.mxu0 %v472
      %518 = vmatpush1.bf16.msra.mxu0 %v471
      %519 = vmatprep.subr.bf16.mxu0 %v475
      %520 = vmatpush1.bf16.msra.mxu0 %v474
      %521 = vmatprep.subr.bf16.mxu0 %v478
      %522 = vmatpush1.bf16.msra.mxu0 %v477
      %523 = vmatprep.subr.bf16.mxu0 %v481
      %524 = vmatpush1.bf16.msra.mxu0 %v480
      %525 = vmatprep.subr.bf16.mxu0 %v484
      %526 = vmatpush1.bf16.msra.mxu0 %v483
      %527 = vmatprep.subr.bf16.mxu0 %v487
      %528 = vmatpush1.bf16.msra.mxu0 %v486
      %529 = vmatprep.subr.bf16.mxu0 0
      %530 = vmatpush1.bf16.msra.mxu0 0
      %531 = vmatprep.subr.bf16.mxu0 0
      %532 = vmatpush1.bf16.msra.mxu0 0
      %533 = vmatprep.subr.bf16.mxu0 0
      %534 = vmatpush1.bf16.msra.mxu0 0
      %535 = vmatprep.subr.bf16.mxu0 0
      %536 = vmatpush1.bf16.msra.mxu0 0
      %537 = vmatprep.subr.bf16.mxu0 0
      %538 = vmatpush1.bf16.msra.mxu0 0
      %539 = vmatprep.subr.bf16.mxu0 0
      %540 = vmatpush1.bf16.msra.mxu0 0
      %541 = vmatprep.subr.bf16.mxu0 0
      %542 = vmatpush1.bf16.msra.mxu0 0
      %543 = vmatprep.subr.bf16.mxu0 0
      %544 = vmatpush1.bf16.msra.mxu0 0
      %545 = vmatprep.mubr.bf16.mxu0 0
      %546 = vmatmul.mubr.bf16.gmra.mrb[0].mxu0 %v328
      %v547 = vpop.f32.mrb[0].mxu0
      %v548 = vadd.f32 %v373, %v547
      %v549 = vpop.f32.mrb[0].mxu0
      %v550 = vadd.f32 %v377, %v549
      %v551 = vpop.f32.mrb[0].mxu0
      %v552 = vadd.f32 %v373, %v551
      %v553 = vpop.f32.mrb[0].mxu0
      %v554 = vadd.f32 %v377, %v553
      %555 = vmatprep.mubr.bf16.mxu0 0
      %556 = vmatmul.mubr.bf16.gmra.mrb[0].mxu0 %v329
      %v557 = vpop.f32.mrb[0].mxu0
      %v558 = vadd.f32 %v373, %v557
      %v559 = vpop.f32.mrb[0].mxu0
      %v560 = vadd.f32 %v377, %v559
      %v561 = vpop.f32.mrb[0].mxu0
      %v562 = vadd.f32 %v373, %v561
      %v563 = vpop.f32.mrb[0].mxu0
      %v564 = vadd.f32 %v377, %v563
      %565 = vmatprep.mubr.bf16.mxu0 0
      %566 = vmatmul.mubr.bf16.gmra.mrb[0].mxu0 %v330
      %v567 = vpop.f32.mrb[0].mxu0
      %v568 = vadd.f32 %v373, %v567
      %v569 = vpop.f32.mrb[0].mxu0
      %v570 = vadd.f32 %v377, %v569
      %v571 = vpop.f32.mrb[0].mxu0
      %v572 = vadd.f32 %v373, %v571
      %v573 = vpop.f32.mrb[0].mxu0
      %v574 = vadd.f32 %v377, %v573
      %575 = vmatprep.mubr.bf16.mxu0 0
      %576 = vmatmul.mubr.bf16.gmra.mrb[0].mxu0 %v331
      %v577 = vpop.f32.mrb[0].mxu0
      %v578 = vadd.f32 %v373, %v577
      %v579 = vpop.f32.mrb[0].mxu0
      %v580 = vadd.f32 %v377, %v579
      %v581 = vpop.f32.mrb[0].mxu0
      %v582 = vadd.f32 %v373, %v581
      %v583 = vpop.f32.mrb[0].mxu0
      %v584 = vadd.f32 %v377, %v583
      %585 = vmatprep.mubr.bf16.mxu0 0
      %586 = vmatmul.mubr.bf16.gmra.mrb[0].mxu0 %v332
      %v587 = vpop.f32.mrb[0].mxu0
      %v588 = vadd.f32 %v373, %v587
      %v589 = vpop.f32.mrb[0].mxu0
      %v590 = vadd.f32 %v377, %v589
      %v591 = vpop.f32.mrb[0].mxu0
      %v592 = vadd.f32 %v373, %v591
      %v593 = vpop.f32.mrb[0].mxu0
      %v594 = vadd.f32 %v377, %v593
      %595 = vmatprep.mubr.bf16.mxu0 0
      %596 = vmatmul.mubr.bf16.gmra.mrb[0].mxu0 %v333
      %v597 = vpop.f32.mrb[0].mxu0
      %v598 = vadd.f32 %v373, %v597
      %v599 = vpop.f32.mrb[0].mxu0
      %v600 = vadd.f32 %v377, %v599
      %v601 = vpop.f32.mrb[0].mxu0
      %v602 = vadd.f32 %v373, %v601
      %v603 = vpop.f32.mrb[0].mxu0
      %v604 = vadd.f32 %v377, %v603
      %605 = vmatprep.mubr.bf16.mxu0 0
      %606 = vmatmul.mubr.bf16.gmra.mrb[0].mxu0 %v334
      %v607 = vpop.f32.mrb[0].mxu0
      %v608 = vadd.f32 %v373, %v607
      %v609 = vpop.f32.mrb[0].mxu0
      %v610 = vadd.f32 %v377, %v609
      %v611 = vpop.f32.mrb[0].mxu0
      %v612 = vadd.f32 %v373, %v611
      %v613 = vpop.f32.mrb[0].mxu0
      %v614 = vadd.f32 %v377, %v613
      %615 = vmatprep.mubr.bf16.mxu0 0
      %616 = vmatmul.mubr.bf16.gmra.mrb[0].mxu0 %v335
      %v617 = vpop.f32.mrb[0].mxu0
      %v618 = vadd.f32 %v373, %v617
      %v619 = vpop.f32.mrb[0].mxu0
      %v620 = vadd.f32 %v377, %v619
      %v621 = vpop.f32.mrb[0].mxu0
      %v622 = vadd.f32 %v373, %v621
      %v623 = vpop.f32.mrb[0].mxu0
      %v624 = vadd.f32 %v377, %v623
      %625 = vdwg.mxu0
      %626 = vmatprep.subr.bf16.mxu0 0
      %627 = vmatpush1.bf16.msra.mxu0 %v467
      %628 = vmatprep.subr.bf16.mxu0 0
      %629 = vmatpush1.bf16.msra.mxu0 %v470
      %630 = vmatprep.subr.bf16.mxu0 0
      %631 = vmatpush1.bf16.msra.mxu0 %v473
      %632 = vmatprep.subr.bf16.mxu0 0
      %633 = vmatpush1.bf16.msra.mxu0 %v476
      %634 = vmatprep.subr.bf16.mxu0 0
      %635 = vmatpush1.bf16.msra.mxu0 %v479
      %636 = vmatprep.subr.bf16.mxu0 0
      %637 = vmatpush1.bf16.msra.mxu0 %v482
      %638 = vmatprep.subr.bf16.mxu0 0
      %639 = vmatpush1.bf16.msra.mxu0 %v485
      %640 = vmatprep.subr.bf16.mxu0 0
      %641 = vmatpush1.bf16.msra.mxu0 %v488
      %642 = vmatprep.subr.bf16.mxu0 0
      %643 = vmatpush1.bf16.msra.mxu0 0
      %644 = vmatprep.subr.bf16.mxu0 0
      %645 = vmatpush1.bf16.msra.mxu0 0
      %646 = vmatprep.subr.bf16.mxu0 0
      %647 = vmatpush1.bf16.msra.mxu0 0
      %648 = vmatprep.subr.bf16.mxu0 0
      %649 = vmatpush1.bf16.msra.mxu0 0
      %650 = vmatprep.subr.bf16.mxu0 0
      %651 = vmatpush1.bf16.msra.mxu0 0
      %652 = vmatprep.subr.bf16.mxu0 0
      %653 = vmatpush1.bf16.msra.mxu0 0
      %654 = vmatprep.subr.bf16.mxu0 0
      %655 = vmatpush1.bf16.msra.mxu0 0
      %656 = vmatprep.subr.bf16.mxu0 0
      %657 = vmatpush1.bf16.msra.mxu0 0
      %658 = vmatprep.mubr.bf16.mxu0 0
      %659 = vmatmul.mubr.bf16.gmra.mrb[0].mxu0 %v328
      %v660 = vpop.f32.mrb[0].mxu0
      %v661 = vadd.f32 %v381, %v660
      %v662 = vpop.f32.mrb[0].mxu0
      %v663 = vpop.f32.mrb[0].mxu0
      %v664 = vadd.f32 %v381, %v663
      %v665 = vpop.f32.mrb[0].mxu0
      %666 = vmatprep.mubr.bf16.mxu0 0
      %667 = vmatmul.mubr.bf16.gmra.mrb[0].mxu0 %v329
      %v668 = vpop.f32.mrb[0].mxu0
      %v669 = vadd.f32 %v381, %v668
      %v670 = vpop.f32.mrb[0].mxu0
      %v671 = vpop.f32.mrb[0].mxu0
      %v672 = vadd.f32 %v381, %v671
      %v673 = vpop.f32.mrb[0].mxu0
      %674 = vmatprep.mubr.bf16.mxu0 0
      %675 = vmatmul.mubr.bf16.gmra.mrb[0].mxu0 %v330
      %v676 = vpop.f32.mrb[0].mxu0
      %v677 = vadd.f32 %v381, %v676
      %v678 = vpop.f32.mrb[0].mxu0
      %v679 = vpop.f32.mrb[0].mxu0
      %v680 = vadd.f32 %v381, %v679
      %v681 = vpop.f32.mrb[0].mxu0
      %682 = vmatprep.mubr.bf16.mxu0 0
      %683 = vmatmul.mubr.bf16.gmra.mrb[0].mxu0 %v331
      %v684 = vpop.f32.mrb[0].mxu0
      %v685 = vadd.f32 %v381, %v684
      %v686 = vpop.f32.mrb[0].mxu0
      %v687 = vpop.f32.mrb[0].mxu0
      %v688 = vadd.f32 %v381, %v687
      %v689 = vpop.f32.mrb[0].mxu0
      %690 = vmatprep.mubr.bf16.mxu0 0
      %691 = vmatmul.mubr.bf16.gmra.mrb[0].mxu0 %v332
      %v692 = vpop.f32.mrb[0].mxu0
      %v693 = vadd.f32 %v381, %v692
      %v694 = vpop.f32.mrb[0].mxu0
      %v695 = vpop.f32.mrb[0].mxu0
      %v696 = vadd.f32 %v381, %v695
      %v697 = vpop.f32.mrb[0].mxu0
      %698 = vmatprep.mubr.bf16.mxu0 0
      %699 = vmatmul.mubr.bf16.gmra.mrb[0].mxu0 %v333
      %v700 = vpop.f32.mrb[0].mxu0
      %v701 = vadd.f32 %v381, %v700
      %v702 = vpop.f32.mrb[0].mxu0
      %v703 = vpop.f32.mrb[0].mxu0
      %v704 = vadd.f32 %v381, %v703
      %v705 = vpop.f32.mrb[0].mxu0
      %706 = vmatprep.mubr.bf16.mxu0 0
      %707 = vmatmul.mubr.bf16.gmra.mrb[0].mxu0 %v334
      %v708 = vpop.f32.mrb[0].mxu0
      %v709 = vadd.f32 %v381, %v708
      %v710 = vpop.f32.mrb[0].mxu0
      %v711 = vpop.f32.mrb[0].mxu0
      %v712 = vadd.f32 %v381, %v711
      %v713 = vpop.f32.mrb[0].mxu0
      %714 = vmatprep.mubr.bf16.mxu0 0
      %715 = vmatmul.mubr.bf16.gmra.mrb[0].mxu0 %v335
      %v716 = vpop.f32.mrb[0].mxu0
      %v717 = vadd.f32 %v381, %v716
      %v718 = vpop.f32.mrb[0].mxu0
      %v719 = vpop.f32.mrb[0].mxu0
      %v720 = vadd.f32 %v381, %v719
      %v721 = vpop.f32.mrb[0].mxu0
      %722 = vdwg.mxu0
      %v723 = vpack.c.bf16 %v552, %v548
      %v724 = vpack.c.bf16 %v562, %v558
      %v725 = vpack.c.bf16 %v572, %v568
      %v726 = vpack.c.bf16 %v582, %v578
      %v727 = vpack.c.bf16 %v592, %v588
      %v728 = vpack.c.bf16 %v602, %v598
      %v729 = vpack.c.bf16 %v612, %v608
      %v730 = vpack.c.bf16 %v622, %v618
      %v739 = vunpack.c.l.b16 %v723
      %v740 = vunpack.c.h.b16 %v723
      %v741 = vunpack.c.l.b16 %v724
      %v742 = vunpack.c.h.b16 %v724
      %v743 = vunpack.c.l.b16 %v725
      %v744 = vunpack.c.h.b16 %v725
      %v745 = vunpack.c.l.b16 %v726
      %v746 = vunpack.c.h.b16 %v726
      %v747 = vunpack.c.l.b16 %v727
      %v748 = vunpack.c.h.b16 %v727
      %v749 = vunpack.c.l.b16 %v728
      %v750 = vunpack.c.h.b16 %v728
      %v751 = vunpack.c.l.b16 %v729
      %v752 = vunpack.c.h.b16 %v729
      %v753 = vunpack.c.l.b16 %v730
      %v754 = vunpack.c.h.b16 %v730
      %v755 = vpack.c.b16 %v739, %v739
      %v756 = vpack.c.b16 %v740, %v740
      %v757 = vpack.c.b16 %v741, %v741
      %v758 = vpack.c.b16 %v742, %v742
      %v759 = vpack.c.b16 %v743, %v743
      %v760 = vpack.c.b16 %v744, %v744
      %v761 = vpack.c.b16 %v745, %v745
      %v762 = vpack.c.b16 %v746, %v746
      %v763 = vpack.c.b16 %v747, %v747
      %v764 = vpack.c.b16 %v748, %v748
      %v765 = vpack.c.b16 %v749, %v749
      %v766 = vpack.c.b16 %v750, %v750
      %v767 = vpack.c.b16 %v751, %v751
      %v768 = vpack.c.b16 %v752, %v752
      %v769 = vpack.c.b16 %v753, %v753
      %v770 = vpack.c.b16 %v754, %v754
      %787 = vst [vmem:[%s289] sm:$0xf] %v755
      %788 = vst [vmem:[%s289 + $0x4] sm:$0xf] %v756
      %789 = vst [vmem:[%s289 + $0x8] sm:$0xf] %v757
      %790 = vst [vmem:[%s289 + $0xc] sm:$0xf] %v758
      %791 = vst [vmem:[%s289 + $0x10] sm:$0xf] %v759
      %792 = vst [vmem:[%s289 + $0x14] sm:$0xf] %v760
      %793 = vst [vmem:[%s289 + $0x18] sm:$0xf] %v761
      %794 = vst [vmem:[%s289 + $0x1c] sm:$0xf] %v762
      %795 = vst [vmem:[%s289 + $0x20] sm:$0xf] %v763
      %796 = vst [vmem:[%s289 + $0x24] sm:$0xf] %v764
      %797 = vst [vmem:[%s289 + $0x28] sm:$0xf] %v765
      %798 = vst [vmem:[%s289 + $0x2c] sm:$0xf] %v766
      %799 = vst [vmem:[%s289 + $0x30] sm:$0xf] %v767
      %800 = vst [vmem:[%s289 + $0x34] sm:$0xf] %v768
      %801 = vst [vmem:[%s289 + $0x38] sm:$0xf] %v769
      %802 = vst [vmem:[%s289 + $0x3c] sm:$0xf] %v770
      %v803 = vpack.c.bf16 %v554, %v550
      %v804 = vpack.c.bf16 %v564, %v560
      %v805 = vpack.c.bf16 %v574, %v570
      %v806 = vpack.c.bf16 %v584, %v580
      %v807 = vpack.c.bf16 %v594, %v590
      %v808 = vpack.c.bf16 %v604, %v600
      %v809 = vpack.c.bf16 %v614, %v610
      %v810 = vpack.c.bf16 %v624, %v620
      %v819 = vunpack.c.l.b16 %v803
      %v820 = vunpack.c.h.b16 %v803
      %v821 = vunpack.c.l.b16 %v804
      %v822 = vunpack.c.h.b16 %v804
      %v823 = vunpack.c.l.b16 %v805
      %v824 = vunpack.c.h.b16 %v805
      %v825 = vunpack.c.l.b16 %v806
      %v826 = vunpack.c.h.b16 %v806
      %v827 = vunpack.c.l.b16 %v807
      %v828 = vunpack.c.h.b16 %v807
      %v829 = vunpack.c.l.b16 %v808
      %v830 = vunpack.c.h.b16 %v808
      %v831 = vunpack.c.l.b16 %v809
      %v832 = vunpack.c.h.b16 %v809
      %v833 = vunpack.c.l.b16 %v810
      %v834 = vunpack.c.h.b16 %v810
      %v835 = vpack.c.b16 %v819, %v819
      %v836 = vpack.c.b16 %v820, %v820
      %v837 = vpack.c.b16 %v821, %v821
      %v838 = vpack.c.b16 %v822, %v822
      %v839 = vpack.c.b16 %v823, %v823
      %v840 = vpack.c.b16 %v824, %v824
      %v841 = vpack.c.b16 %v825, %v825
      %v842 = vpack.c.b16 %v826, %v826
      %v843 = vpack.c.b16 %v827, %v827
      %v844 = vpack.c.b16 %v828, %v828
      %v845 = vpack.c.b16 %v829, %v829
      %v846 = vpack.c.b16 %v830, %v830
      %v847 = vpack.c.b16 %v831, %v831
      %v848 = vpack.c.b16 %v832, %v832
      %v849 = vpack.c.b16 %v833, %v833
      %v850 = vpack.c.b16 %v834, %v834
      %867 = vst [vmem:[%s299] sm:$0xf] %v835
      %868 = vst [vmem:[%s299 + $0x4] sm:$0xf] %v836
      %869 = vst [vmem:[%s299 + $0x8] sm:$0xf] %v837
      %870 = vst [vmem:[%s299 + $0xc] sm:$0xf] %v838
      %871 = vst [vmem:[%s299 + $0x10] sm:$0xf] %v839
      %872 = vst [vmem:[%s299 + $0x14] sm:$0xf] %v840
      %873 = vst [vmem:[%s299 + $0x18] sm:$0xf] %v841
      %874 = vst [vmem:[%s299 + $0x1c] sm:$0xf] %v842
      %875 = vst [vmem:[%s299 + $0x20] sm:$0xf] %v843
      %876 = vst [vmem:[%s299 + $0x24] sm:$0xf] %v844
      %877 = vst [vmem:[%s299 + $0x28] sm:$0xf] %v845
      %878 = vst [vmem:[%s299 + $0x2c] sm:$0xf] %v846
      %879 = vst [vmem:[%s299 + $0x30] sm:$0xf] %v847
      %880 = vst [vmem:[%s299 + $0x34] sm:$0xf] %v848
      %881 = vst [vmem:[%s299 + $0x38] sm:$0xf] %v849
      %882 = vst [vmem:[%s299 + $0x3c] sm:$0xf] %v850
      %v883 = vpack.c.bf16 %v664, %v661
      %v884 = vpack.c.bf16 %v672, %v669
      %v885 = vpack.c.bf16 %v680, %v677
      %v886 = vpack.c.bf16 %v688, %v685
      %v887 = vpack.c.bf16 %v696, %v693
      %v888 = vpack.c.bf16 %v704, %v701
      %v889 = vpack.c.bf16 %v712, %v709
      %v890 = vpack.c.bf16 %v720, %v717
      %v899 = vunpack.c.l.b16 %v883
      %v900 = vunpack.c.h.b16 %v883
      %v901 = vunpack.c.l.b16 %v884
      %v902 = vunpack.c.h.b16 %v884
      %v903 = vunpack.c.l.b16 %v885
      %v904 = vunpack.c.h.b16 %v885
      %v905 = vunpack.c.l.b16 %v886
      %v906 = vunpack.c.h.b16 %v886
      %v907 = vunpack.c.l.b16 %v887
      %v908 = vunpack.c.h.b16 %v887
      %v909 = vunpack.c.l.b16 %v888
      %v910 = vunpack.c.h.b16 %v888
      %v911 = vunpack.c.l.b16 %v889
      %v912 = vunpack.c.h.b16 %v889
      %v913 = vunpack.c.l.b16 %v890
      %v914 = vunpack.c.h.b16 %v890
      %v915 = vpack.c.b16 %v899, %v899
      %v916 = vpack.c.b16 %v900, %v900
      %v917 = vpack.c.b16 %v901, %v901
      %v918 = vpack.c.b16 %v902, %v902
      %v919 = vpack.c.b16 %v903, %v903
      %v920 = vpack.c.b16 %v904, %v904
      %v921 = vpack.c.b16 %v905, %v905
      %v922 = vpack.c.b16 %v906, %v906
      %v923 = vpack.c.b16 %v907, %v907
      %v924 = vpack.c.b16 %v908, %v908
      %v925 = vpack.c.b16 %v909, %v909
      %v926 = vpack.c.b16 %v910, %v910
      %v927 = vpack.c.b16 %v911, %v911
      %v928 = vpack.c.b16 %v912, %v912
      %v929 = vpack.c.b16 %v913, %v913
      %v930 = vpack.c.b16 %v914, %v914
      %947 = vst [vmem:[%s309] sm:$0xf] %v915
      %948 = vst [vmem:[%s309 + $0x4] sm:$0xf] %v916
      %949 = vst [vmem:[%s309 + $0x8] sm:$0xf] %v917
      %950 = vst [vmem:[%s309 + $0xc] sm:$0xf] %v918
      %951 = vst [vmem:[%s309 + $0x10] sm:$0xf] %v919
      %952 = vst [vmem:[%s309 + $0x14] sm:$0xf] %v920
      %953 = vst [vmem:[%s309 + $0x18] sm:$0xf] %v921
      %954 = vst [vmem:[%s309 + $0x1c] sm:$0xf] %v922
      %955 = vst [vmem:[%s309 + $0x20] sm:$0xf] %v923
      %956 = vst [vmem:[%s309 + $0x24] sm:$0xf] %v924
      %957 = vst [vmem:[%s309 + $0x28] sm:$0xf] %v925
      %958 = vst [vmem:[%s309 + $0x2c] sm:$0xf] %v926
      %959 = vst [vmem:[%s309 + $0x30] sm:$0xf] %v927
      %960 = vst [vmem:[%s309 + $0x34] sm:$0xf] %v928
      %961 = vst [vmem:[%s309 + $0x38] sm:$0xf] %v929
      %962 = vst [vmem:[%s309 + $0x3c] sm:$0xf] %v930
      %s963 = smul.u32 16, %s22
      %p964 = scmp.lt.s32.totalorder %s21, 1
      %s965 = scalar_select %p964, %s21, 1
      %p966 = scmp.lt.s32.totalorder %s963, 31
      %s967 = scalar_select %p966, %s963, 31
      %s968 = smul.addr %s965, 32
      %s969 = sadd.s32 %s967, %s968
      %s970 = smul.addr %s969, 4
      %s971 = scalar_lea.vmem %s3, %s970
      %s972 = smul.u32 16, %s22
      %p973 = scmp.lt.s32.totalorder %s21, 1
      %s974 = scalar_select %p973, %s21, 1
      %p975 = scmp.lt.s32.totalorder %s972, 31
      %s976 = scalar_select %p975, %s972, 31
      %s977 = smul.addr %s974, 32
      %s978 = sadd.s32 %s976, %s977
      %s979 = smul.addr %s978, 4
      %s980 = scalar_lea.vmem %s4, %s979
      %s981 = smul.u32 16, %s22
      %p982 = scmp.lt.s32.totalorder %s21, 1
      %s983 = scalar_select %p982, %s21, 1
      %p984 = scmp.lt.s32.totalorder %s981, 31
      %s985 = scalar_select %p984, %s981, 31
      %s986 = smul.addr %s983, 32
      %s987 = sadd.s32 %s985, %s986
      %s988 = smul.addr %s987, 4
      %s989 = scalar_lea.vmem %s5, %s988
      // Predicated region
      $region33: #{xformers_attention_pallas.2} parent=31 // pred_check
        %p990 = pneg %p119
      $region34: #{xformers_attention_pallas.2} parent=31 // pred_check_branch
        %992 = sbr.rel (%p990) target = $region36
      $region35: #{xformers_attention_pallas.2} parent=31 // pred_region
        %s993 = smul.u32 16, %s22
      $region36: #{xformers_attention_pallas.2} parent=31 // pred_fallthru
        _
      // Predicated region
      $region37: #{xformers_attention_pallas.2} parent=31 // pred_check
        %p994 = pneg %p147
      $region38: #{xformers_attention_pallas.2} parent=31 // pred_check_branch
        %996 = sbr.rel (%p994) target = $region40
      $region39: #{xformers_attention_pallas.2} parent=31 // pred_region
        %s997 = smul.u32 16, %s22
      $region40: #{xformers_attention_pallas.2} parent=31 // pred_fallthru
        _
      // Predicated region
      $region41: #{xformers_attention_pallas.2} parent=31 // pred_check
        %p998 = pneg %p175
      $region42: #{xformers_attention_pallas.2} parent=31 // pred_check_branch
        %1000 = sbr.rel (%p998) target = $region44
      $region43: #{xformers_attention_pallas.2} parent=31 // pred_region
        %s1001 = smul.u32 16, %s22
      $region44: #{xformers_attention_pallas.2} parent=31 // pred_fallthru
        _
    $region32: #{xformers_attention_pallas.2} parent=5 // pred_fallthru
      _
    %p1002 = scmp.le.s32.totalorder 2, %s12
    // Predicated region
    $region45: #{xformers_attention_pallas.2} parent=5 // pred_check
      %p1003 = pneg %p1002
    $region46: #{xformers_attention_pallas.2} parent=5 // pred_check_branch
      %1005 = sbr.rel (%p1003) target = $region48
    $region47: #{xformers_attention_pallas.2} parent=5 // pred_region
      %s1006 = ssub.s32 %s12, 2
      // Predicated region
      $region49: #{xformers_attention_pallas.2} parent=47 // pred_check
        %p1007 = pneg %p125
      $region50: #{xformers_attention_pallas.2} parent=47 // pred_check_branch
        %1009 = sbr.rel (%p1007) target = $region52
      $region51: #{xformers_attention_pallas.2} parent=47 // pred_region
        %s1010 = smul.u32 16, %s24
        %p1011 = scmp.lt.s32.totalorder %s23, 1
        %s1012 = scalar_select %p1011, %s23, 1
        %p1013 = scmp.lt.s32.totalorder %s1010, 31
        %s1014 = scalar_select %p1013, %s1010, 31
        %s1015 = smul.addr %s1012, 32
        %s1016 = sadd.s32 %s1014, %s1015
        %s1017 = smul.addr %s1016, 4
        %s1018 = scalar_lea.vmem %s3, %s1017
      $region52: #{xformers_attention_pallas.2} parent=47 // pred_fallthru
        _
      // Predicated region
      $region53: #{xformers_attention_pallas.2} parent=47 // pred_check
        %p1019 = pneg %p153
      $region54: #{xformers_attention_pallas.2} parent=47 // pred_check_branch
        %1021 = sbr.rel (%p1019) target = $region56
      $region55: #{xformers_attention_pallas.2} parent=47 // pred_region
        %s1022 = smul.u32 16, %s24
        %p1023 = scmp.lt.s32.totalorder %s23, 1
        %s1024 = scalar_select %p1023, %s23, 1
        %p1025 = scmp.lt.s32.totalorder %s1022, 31
        %s1026 = scalar_select %p1025, %s1022, 31
        %s1027 = smul.addr %s1024, 32
        %s1028 = sadd.s32 %s1026, %s1027
        %s1029 = smul.addr %s1028, 4
        %s1030 = scalar_lea.vmem %s4, %s1029
      $region56: #{xformers_attention_pallas.2} parent=47 // pred_fallthru
        _
      // Predicated region
      $region57: #{xformers_attention_pallas.2} parent=47 // pred_check
        %p1031 = pneg %p181
      $region58: #{xformers_attention_pallas.2} parent=47 // pred_check_branch
        %1033 = sbr.rel (%p1031) target = $region60
      $region59: #{xformers_attention_pallas.2} parent=47 // pred_region
        %s1034 = smul.u32 16, %s24
        %p1035 = scmp.lt.s32.totalorder %s23, 1
        %s1036 = scalar_select %p1035, %s23, 1
        %p1037 = scmp.lt.s32.totalorder %s1034, 31
        %s1038 = scalar_select %p1037, %s1034, 31
        %s1039 = smul.addr %s1036, 32
        %s1040 = sadd.s32 %s1038, %s1039
        %s1041 = smul.addr %s1040, 4
        %s1042 = scalar_lea.vmem %s5, %s1041
      $region60: #{xformers_attention_pallas.2} parent=47 // pred_fallthru
        _
    $region48: #{xformers_attention_pallas.2} parent=5 // pred_fallthru
      _
  $region6: #{xformers_attention_pallas.2} parent=0 // loop_footer
    %s16 = sadd.s32 1, %s12
  $region7: #{xformers_attention_pallas.2} parent=0 // loop_footer_branch
    %11 = sbr.rel target = $region3
  $region8: #{xformers_attention_pallas.2} parent=0 // loop_exit
    _

// kernel: xformers_attention_pallas.3
$region0: #{xformers_attention_pallas.3}
  #allocation0 [shape = 'u32[]', space=smem, size = 0x4, offset = 0x4, fixed_abs, tag = 'smem constant byte address 0x4 - core index']
  #allocation1 [shape = 'u32[144,128]{1,0:T(1,128)}', space=vmem, size = 0x12000, scoped, tag = 'internal scratch']
  #allocation2 [shape = 'f32[128,1]{1,0:T(8,128)}', space=vmem, size = 0x10000, scoped, tag = 'scratch operand']
  #allocation3 [shape = 'f32[128,1]{1,0:T(8,128)}', space=vmem, size = 0x10000, scoped, tag = 'scratch operand']
  #allocation4 [shape = 'f32[128,128]{1,0:T(8,128)}', space=vmem, size = 0x10000, scoped, tag = 'scratch operand']
  %s0 = inlined_call_operand.vmem [shape: bf16[2,256,128], index: 0, kind: input, shape index: {}]
  %s1 = inlined_call_operand.vmem [shape: bf16[2,256,128], index: 1, kind: input, shape index: {}]
  %s2 = inlined_call_operand.vmem [shape: bf16[2,256,128], index: 2, kind: input, shape index: {}]
  %s3 = inlined_call_operand.vmem [shape: bf16[128,128], index: 3, kind: input, shape index: {}]
  %s4 = inlined_call_operand.vmem [shape: f32[1,128], index: 4, kind: input, shape index: {}]
  %s5 = inlined_call_operand.hbm [shape: f32[2,256,128], index: 5, kind: output, shape index: {}]
  %s6 = sld [smem:[#allocation0]]
  $region61: #{xformers_attention_pallas.3} parent=0
    _
  %s8 = ssub.s32 1, %s6
  %s9 = scalar_select 0, %s8, %s6
  $region1: #{xformers_attention_pallas.3} parent=0
    #allocation5 [shape = 'u8[131072]{0}', space=vmem, size = 0x20000, scoped, tag = 'output window, operand 0']
    #allocation6 [shape = 's32[2]{0}', space=sflag, size = 0x8, scoped, tag = 'scoped memory for xformers_attention_pallas.3']
    %10 = vsyncpa [#allocation6], 0
    %s11 = scalar_lea.sflag [#allocation6], 1
    %12 = vsyncpa %s11, 0
    loop: start=0, step=1, limit=10
    $region2: #{xformers_attention_pallas.3} parent=1 // loop_pre_header
      _
    $region3: #{xformers_attention_pallas.3} parent=1 // loop_header
      %s14 = sphi 0, %s18
      %p15 = scmp.ge.s32.totalorder %s14, 10
      %s21 = sphi 0, %s40
      %s22 = sphi 0, %s36
      %s23 = sphi 0, %s32
      %s24 = sphi 0, %s21
      %s25 = sphi 0, %s22
      %s26 = sphi 0, %s23
      %s27 = sphi 0, %s24
      %s28 = sphi 0, %s25
      %s29 = sphi 0, %s26
      %s45 = sphi 0, %s47
      %s48 = sphi 0, %s45
      %s49 = sphi 0, %s48
      %s65 = sphi 0, %s49
      %s73 = sphi 0, %s75
      %s76 = sphi 0, %s73
      %s77 = sphi 0, %s76
      %s93 = sphi 0, %s77
      %s101 = sphi 0, %s103
      %s104 = sphi 0, %s101
      %s105 = sphi 0, %s104
      %s121 = sphi 0, %s105
      %s125 = sphi 0, %s125
      %s127 = sphi 0, %s125
      %s128 = sphi 0, %s127
      %s142 = sphi 0, %s128
      %s146 = sphi 0, %s146
      %s148 = sphi 0, %s146
      %s149 = sphi 0, %s148
      %s163 = sphi 0, %s149
      %s171 = sphi 0, %s173
      %s174 = sphi 0, %s171
      %s175 = sphi 0, %s174
      %s191 = sphi 0, %s175
    $region4: #{xformers_attention_pallas.3} parent=1 // loop_header_branch
      %17 = sbr.rel (%p15) target = $region8
    $region5: #{xformers_attention_pallas.3} parent=1 // loop_body
      %s19 = ssub.s32 %s14, 1
      %s20 = ssub.s32 %s14, 2
      %s30 = sadd.s32 1, %s23
      %p31 = scmp.ge.s32.totalorder %s30, 2
      %s32 = scalar_select %p31, 0, %s30
      %s33 = sadd.s32 1, %s22
      %s34 = scalar_select %p31, %s33, %s22
      %p35 = scmp.ge.s32.totalorder %s34, 2
      %s36 = scalar_select %p35, 0, %s34
      %s37 = sadd.s32 1, %s21
      %s38 = scalar_select %p35, %s37, %s21
      %p39 = scmp.ge.s32.totalorder %s38, 2
      %s40 = scalar_select %p39, 0, %s38
      %s41 = ssub.s32 %s21, %s40
      %s42 = ssub.s32 %s22, %s36
      %s43 = sor.u32 %s41, %s42
      %p44 = scmp.eq.s32.totalorder %s43, 0
      %s46 = sadd.s32 %s45, 1
      %s47 = scalar_select %p44, %s45, %s46
      %p50 = pneg %p44
      %p51 = scmp.eq.s32.totalorder %s14, 7
      %p52 = por %p50, %p51
      %p53 = scmp.ne.s32.totalorder %s45, %s48
      %p54 = scmp.eq.s32.totalorder %s14, 0
      %p55 = por %p53, %p54
      %p56 = scmp.ne.s32.totalorder %s45, %s48
      %p57 = scmp.eq.s32.totalorder %s19, 7
      %p58 = por %p56, %p57
      %p59 = scmp.ne.s32.totalorder %s48, %s49
      %p60 = scmp.eq.s32.totalorder %s19, 0
      %p61 = por %p59, %p60
      %p62 = scmp.ne.s32.totalorder %s48, %s49
      %p63 = scmp.eq.s32.totalorder %s20, 7
      %p64 = por %p62, %p63
      %p66 = scmp.ne.s32.totalorder %s49, %s65
      %p67 = scmp.eq.s32.totalorder %s20, 0
      %p68 = por %p66, %p67
      %s69 = ssub.s32 %s21, %s40
      %s70 = ssub.s32 %s23, %s32
      %s71 = sor.u32 %s69, %s70
      %p72 = scmp.eq.s32.totalorder %s71, 0
      %s74 = sadd.s32 %s73, 1
      %s75 = scalar_select %p72, %s73, %s74
      %p78 = pneg %p72
      %p79 = scmp.eq.s32.totalorder %s14, 7
      %p80 = por %p78, %p79
      %p81 = scmp.ne.s32.totalorder %s73, %s76
      %p82 = scmp.eq.s32.totalorder %s14, 0
      %p83 = por %p81, %p82
      %p84 = scmp.ne.s32.totalorder %s73, %s76
      %p85 = scmp.eq.s32.totalorder %s19, 7
      %p86 = por %p84, %p85
      %p87 = scmp.ne.s32.totalorder %s76, %s77
      %p88 = scmp.eq.s32.totalorder %s19, 0
      %p89 = por %p87, %p88
      %p90 = scmp.ne.s32.totalorder %s76, %s77
      %p91 = scmp.eq.s32.totalorder %s20, 7
      %p92 = por %p90, %p91
      %p94 = scmp.ne.s32.totalorder %s77, %s93
      %p95 = scmp.eq.s32.totalorder %s20, 0
      %p96 = por %p94, %p95
      %s97 = ssub.s32 %s21, %s40
      %s98 = ssub.s32 %s23, %s32
      %s99 = sor.u32 %s97, %s98
      %p100 = scmp.eq.s32.totalorder %s99, 0
      %s102 = sadd.s32 %s101, 1
      %s103 = scalar_select %p100, %s101, %s102
      %p106 = pneg %p100
      %p107 = scmp.eq.s32.totalorder %s14, 7
      %p108 = por %p106, %p107
      %p109 = scmp.ne.s32.totalorder %s101, %s104
      %p110 = scmp.eq.s32.totalorder %s14, 0
      %p111 = por %p109, %p110
      %p112 = scmp.ne.s32.totalorder %s101, %s104
      %p113 = scmp.eq.s32.totalorder %s19, 7
      %p114 = por %p112, %p113
      %p115 = scmp.ne.s32.totalorder %s104, %s105
      %p116 = scmp.eq.s32.totalorder %s19, 0
      %p117 = por %p115, %p116
      %p118 = scmp.ne.s32.totalorder %s104, %s105
      %p119 = scmp.eq.s32.totalorder %s20, 7
      %p120 = por %p118, %p119
      %p122 = scmp.ne.s32.totalorder %s105, %s121
      %p123 = scmp.eq.s32.totalorder %s20, 0
      %p124 = por %p122, %p123
      %s126 = sadd.s32 %s125, 1
      %p129 = scmp.eq.s32.totalorder %s14, 7
      %p130 = scmp.ne.s32.totalorder %s125, %s127
      %p131 = scmp.eq.s32.totalorder %s14, 0
      %p132 = por %p130, %p131
      %p133 = scmp.ne.s32.totalorder %s125, %s127
      %p134 = scmp.eq.s32.totalorder %s19, 7
      %p135 = por %p133, %p134
      %p136 = scmp.ne.s32.totalorder %s127, %s128
      %p137 = scmp.eq.s32.totalorder %s19, 0
      %p138 = por %p136, %p137
      %p139 = scmp.ne.s32.totalorder %s127, %s128
      %p140 = scmp.eq.s32.totalorder %s20, 7
      %p141 = por %p139, %p140
      %p143 = scmp.ne.s32.totalorder %s128, %s142
      %p144 = scmp.eq.s32.totalorder %s20, 0
      %p145 = por %p143, %p144
      %s147 = sadd.s32 %s146, 1
      %p150 = scmp.eq.s32.totalorder %s14, 7
      %p151 = scmp.ne.s32.totalorder %s146, %s148
      %p152 = scmp.eq.s32.totalorder %s14, 0
      %p153 = por %p151, %p152
      %p154 = scmp.ne.s32.totalorder %s146, %s148
      %p155 = scmp.eq.s32.totalorder %s19, 7
      %p156 = por %p154, %p155
      %p157 = scmp.ne.s32.totalorder %s148, %s149
      %p158 = scmp.eq.s32.totalorder %s19, 0
      %p159 = por %p157, %p158
      %p160 = scmp.ne.s32.totalorder %s148, %s149
      %p161 = scmp.eq.s32.totalorder %s20, 7
      %p162 = por %p160, %p161
      %p164 = scmp.ne.s32.totalorder %s149, %s163
      %p165 = scmp.eq.s32.totalorder %s20, 0
      %p166 = por %p164, %p165
      %s167 = ssub.s32 %s21, %s40
      %s168 = ssub.s32 %s22, %s36
      %s169 = sor.u32 %s167, %s168
      %p170 = scmp.eq.s32.totalorder %s169, 0
      %s172 = sadd.s32 %s171, 1
      %s173 = scalar_select %p170, %s171, %s172
      %p176 = pneg %p170
      %p177 = scmp.eq.s32.totalorder %s14, 7
      %p178 = por %p176, %p177
      %p179 = scmp.ne.s32.totalorder %s171, %s174
      %p180 = scmp.eq.s32.totalorder %s14, 0
      %p181 = por %p179, %p180
      %p182 = scmp.ne.s32.totalorder %s171, %s174
      %p183 = scmp.eq.s32.totalorder %s19, 7
      %p184 = por %p182, %p183
      %p185 = scmp.ne.s32.totalorder %s174, %s175
      %p186 = scmp.eq.s32.totalorder %s19, 0
      %p187 = por %p185, %p186
      %p188 = scmp.ne.s32.totalorder %s174, %s175
      %p189 = scmp.eq.s32.totalorder %s20, 7
      %p190 = por %p188, %p189
      %p192 = scmp.ne.s32.totalorder %s175, %s191
      %p193 = scmp.eq.s32.totalorder %s20, 0
      %p194 = por %p192, %p193
      %p195 = scmp.le.s32.totalorder 1, %s14
      %p196 = scmp.lt.s32.totalorder %s14, 9
      %p197 = pnand %p195, %p196
      %p198 = pneg %p197
      // Predicated region
      $region9: #{xformers_attention_pallas.3} parent=5 // pred_check
        _
      $region10: #{xformers_attention_pallas.3} parent=5 // pred_check_branch
        %200 = sbr.rel (%p197) target = $region12
      $region11: #{xformers_attention_pallas.3} parent=5 // pred_region
        %s201 = ssub.s32 %s14, 1
        // Predicated region
        $region13: #{xformers_attention_pallas.3} parent=11 // pred_check
          %p202 = pneg %p138
        $region14: #{xformers_attention_pallas.3} parent=11 // pred_check_branch
          %204 = sbr.rel (%p202) target = $region16
        $region15: #{xformers_attention_pallas.3} parent=11 // pred_region
          _
        $region16: #{xformers_attention_pallas.3} parent=11 // pred_fallthru
          _
        // Predicated region
        $region17: #{xformers_attention_pallas.3} parent=11 // pred_check
          %p205 = pneg %p159
        $region18: #{xformers_attention_pallas.3} parent=11 // pred_check_branch
          %207 = sbr.rel (%p205) target = $region20
        $region19: #{xformers_attention_pallas.3} parent=11 // pred_region
          _
        $region20: #{xformers_attention_pallas.3} parent=11 // pred_fallthru
          _
      $region12: #{xformers_attention_pallas.3} parent=5 // pred_fallthru
        _
      %p208 = scmp.lt.s32.totalorder %s14, 8
      // Predicated region
      $region21: #{xformers_attention_pallas.3} parent=5 // pred_check
        %p209 = pneg %p208
      $region22: #{xformers_attention_pallas.3} parent=5 // pred_check_branch
        %211 = sbr.rel (%p209) target = $region24
      $region23: #{xformers_attention_pallas.3} parent=5 // pred_region
        // Predicated region
        $region25: #{xformers_attention_pallas.3} parent=23 // pred_check
          %p212 = pneg %p55
        $region26: #{xformers_attention_pallas.3} parent=23 // pred_check_branch
          %214 = sbr.rel (%p212) target = $region28
        $region27: #{xformers_attention_pallas.3} parent=23 // pred_region
          %s215 = smul.u32 16, %s22
          %p216 = scmp.lt.s32.totalorder %s21, 1
          %s217 = scalar_select %p216, %s21, 1
          %p218 = scmp.lt.s32.totalorder %s215, 31
          %s219 = scalar_select %p218, %s215, 31
          %s220 = smul.addr %s217, 32
          %s221 = sadd.s32 %s219, %s220
          %s222 = smul.addr %s221, 4
          %s223 = scalar_lea.vmem %s0, %s222
          %s224 = smul.u32 16, %s22
        $region28: #{xformers_attention_pallas.3} parent=23 // pred_fallthru
          _
        // Predicated region
        $region29: #{xformers_attention_pallas.3} parent=23 // pred_check
          %p225 = pneg %p83
        $region30: #{xformers_attention_pallas.3} parent=23 // pred_check_branch
          %227 = sbr.rel (%p225) target = $region32
        $region31: #{xformers_attention_pallas.3} parent=23 // pred_region
          %s228 = smul.u32 16, %s23
          %p229 = scmp.lt.s32.totalorder %s21, 1
          %s230 = scalar_select %p229, %s21, 1
          %p231 = scmp.lt.s32.totalorder %s228, 31
          %s232 = scalar_select %p231, %s228, 31
          %s233 = smul.addr %s230, 32
          %s234 = sadd.s32 %s232, %s233
          %s235 = smul.addr %s234, 4
          %s236 = scalar_lea.vmem %s1, %s235
          %s237 = smul.u32 16, %s23
        $region32: #{xformers_attention_pallas.3} parent=23 // pred_fallthru
          _
        // Predicated region
        $region33: #{xformers_attention_pallas.3} parent=23 // pred_check
          %p238 = pneg %p111
        $region34: #{xformers_attention_pallas.3} parent=23 // pred_check_branch
          %240 = sbr.rel (%p238) target = $region36
        $region35: #{xformers_attention_pallas.3} parent=23 // pred_region
          %s241 = smul.u32 16, %s23
          %p242 = scmp.lt.s32.totalorder %s21, 1
          %s243 = scalar_select %p242, %s21, 1
          %p244 = scmp.lt.s32.totalorder %s241, 31
          %s245 = scalar_select %p244, %s241, 31
          %s246 = smul.addr %s243, 32
          %s247 = sadd.s32 %s245, %s246
          %s248 = smul.addr %s247, 4
          %s249 = scalar_lea.vmem %s2, %s248
          %s250 = smul.u32 16, %s23
        $region36: #{xformers_attention_pallas.3} parent=23 // pred_fallthru
          _
      $region24: #{xformers_attention_pallas.3} parent=5 // pred_fallthru
        _
      %p251 = scmp.le.s32.totalorder 1, %s14
      %p252 = scmp.lt.s32.totalorder %s14, 9
      %p253 = pnand %p251, %p252
      %p254 = pneg %p253
      // Predicated region
      $region37: #{xformers_attention_pallas.3} parent=5 // pred_check
        _
      $region38: #{xformers_attention_pallas.3} parent=5 // pred_check_branch
        %256 = sbr.rel (%p253) target = $region40
      $region39: #{xformers_attention_pallas.3} parent=5 // pred_region
        %s257 = ssub.s32 %s14, 1
        %s258 = smul.u32 16, %s25
        %p259 = scmp.lt.s32.totalorder %s24, 1
        %s260 = scalar_select %p259, %s24, 1
        %p261 = scmp.lt.s32.totalorder %s258, 31
        %s262 = scalar_select %p261, %s258, 31
        %s263 = smul.addr %s260, 32
        %s264 = sadd.s32 %s262, %s263
        %s265 = smul.addr %s264, 4
        %s266 = scalar_lea.vmem %s0, %s265
        %p267 = pneg %p61
        %p268 = pneg %p58
        %s269 = smul.u32 16, %s26
        %p270 = scmp.lt.s32.totalorder %s24, 1
        %s271 = scalar_select %p270, %s24, 1
        %p272 = scmp.lt.s32.totalorder %s269, 31
        %s273 = scalar_select %p272, %s269, 31
        %s274 = smul.addr %s271, 32
        %s275 = sadd.s32 %s273, %s274
        %s276 = smul.addr %s275, 4
        %s277 = scalar_lea.vmem %s1, %s276
        %p278 = pneg %p89
        %p279 = pneg %p86
        %s280 = smul.u32 16, %s26
        %p281 = scmp.lt.s32.totalorder %s24, 1
        %s282 = scalar_select %p281, %s24, 1
        %p283 = scmp.lt.s32.totalorder %s280, 31
        %s284 = scalar_select %p283, %s280, 31
        %s285 = smul.addr %s282, 32
        %s286 = sadd.s32 %s284, %s285
        %s287 = smul.addr %s286, 4
        %s288 = scalar_lea.vmem %s2, %s287
        %p289 = pneg %p117
        %p290 = pneg %p114
        %p291 = pneg %p138
        %p292 = pneg %p135
        %p293 = pneg %p159
        %p294 = pneg %p156
        %p295 = pneg %p187
        %p296 = pneg %p184
        %s297 = sand.u32 %s174, 1
        %s298 = scalar_lea.sflag [#allocation6], %s297
        %s299 = sand.u32 %s174, 1
        %s300 = smul.addr %s299, 128
        %s301 = scalar_lea.vmem [#allocation5], %s300
        %s302 = smul.u32 16, %s25
        %p303 = scmp.lt.s32.totalorder %s24, 1
        %s304 = scalar_select %p303, %s24, 1
        %p305 = scmp.lt.s32.totalorder %s302, 31
        %s306 = scalar_select %p305, %s302, 31
        %s307 = smul.addr %s304, 32
        %s308 = sadd.s32 %s306, %s307
        %s309 = smul.addr %s308, 4
        %s310 = scalar_lea.vmem %s0, %s309
        %s311 = smul.u32 16, %s25
        %s312 = smul.u32 16, %s26
        %p313 = scmp.lt.s32.totalorder %s24, 1
        %s314 = scalar_select %p313, %s24, 1
        %p315 = scmp.lt.s32.totalorder %s312, 31
        %s316 = scalar_select %p315, %s312, 31
        %s317 = smul.addr %s314, 32
        %s318 = sadd.s32 %s316, %s317
        %s319 = smul.addr %s318, 4
        %s320 = scalar_lea.vmem %s1, %s319
        %s321 = smul.u32 16, %s26
        %s322 = smul.u32 16, %s26
        %p323 = scmp.lt.s32.totalorder %s24, 1
        %s324 = scalar_select %p323, %s24, 1
        %p325 = scmp.lt.s32.totalorder %s322, 31
        %s326 = scalar_select %p325, %s322, 31
        %s327 = smul.addr %s324, 32
        %s328 = sadd.s32 %s326, %s327
        %s329 = smul.addr %s328, 4
        %s330 = scalar_lea.vmem %s2, %s329
        %s331 = smul.u32 16, %s26
        %s332 = smul.u32 16, %s25
        %p334 = scmp.eq.s32.totalorder %s26, 0
        // Predicated region
        $region41: #{xformers_attention_pallas.3} parent=39 // pred_check
          %p335 = pneg %p334
        $region42: #{xformers_attention_pallas.3} parent=39 // pred_check_branch
          %337 = sbr.rel (%p335) target = $region44
        $region43: #{xformers_attention_pallas.3} parent=39 // pred_region
          %vm338 = vcmask 7168
          %339 = vst.msk [vmem:[#allocation2] sm:$0xff] %vm338, -inf
          %340 = vst.msk [vmem:[#allocation2 + $0x8] sm:$0xff] %vm338, -inf
          %341 = vst.msk [vmem:[#allocation2 + $0x10] sm:$0xff] %vm338, -inf
          %342 = vst.msk [vmem:[#allocation2 + $0x18] sm:$0xff] %vm338, -inf
          %343 = vst.msk [vmem:[#allocation2 + $0x20] sm:$0xff] %vm338, -inf
          %344 = vst.msk [vmem:[#allocation2 + $0x28] sm:$0xff] %vm338, -inf
          %345 = vst.msk [vmem:[#allocation2 + $0x30] sm:$0xff] %vm338, -inf
          %346 = vst.msk [vmem:[#allocation2 + $0x38] sm:$0xff] %vm338, -inf
          %347 = vst.msk [vmem:[#allocation2 + $0x40] sm:$0xff] %vm338, -inf
          %348 = vst.msk [vmem:[#allocation2 + $0x48] sm:$0xff] %vm338, -inf
          %349 = vst.msk [vmem:[#allocation2 + $0x50] sm:$0xff] %vm338, -inf
          %350 = vst.msk [vmem:[#allocation2 + $0x58] sm:$0xff] %vm338, -inf
          %351 = vst.msk [vmem:[#allocation2 + $0x60] sm:$0xff] %vm338, -inf
          %352 = vst.msk [vmem:[#allocation2 + $0x68] sm:$0xff] %vm338, -inf
          %353 = vst.msk [vmem:[#allocation2 + $0x70] sm:$0xff] %vm338, -inf
          %354 = vst.msk [vmem:[#allocation2 + $0x78] sm:$0xff] %vm338, -inf
          %355 = vst.msk [vmem:[#allocation3] sm:$0xff] %vm338, 0.0
          %356 = vst.msk [vmem:[#allocation3 + $0x8] sm:$0xff] %vm338, 0.0
          %357 = vst.msk [vmem:[#allocation3 + $0x10] sm:$0xff] %vm338, 0.0
          %358 = vst.msk [vmem:[#allocation3 + $0x18] sm:$0xff] %vm338, 0.0
          %359 = vst.msk [vmem:[#allocation3 + $0x20] sm:$0xff] %vm338, 0.0
          %360 = vst.msk [vmem:[#allocation3 + $0x28] sm:$0xff] %vm338, 0.0
          %361 = vst.msk [vmem:[#allocation3 + $0x30] sm:$0xff] %vm338, 0.0
          %362 = vst.msk [vmem:[#allocation3 + $0x38] sm:$0xff] %vm338, 0.0
          %363 = vst.msk [vmem:[#allocation3 + $0x40] sm:$0xff] %vm338, 0.0
          %364 = vst.msk [vmem:[#allocation3 + $0x48] sm:$0xff] %vm338, 0.0
          %365 = vst.msk [vmem:[#allocation3 + $0x50] sm:$0xff] %vm338, 0.0
          %366 = vst.msk [vmem:[#allocation3 + $0x58] sm:$0xff] %vm338, 0.0
          %367 = vst.msk [vmem:[#allocation3 + $0x60] sm:$0xff] %vm338, 0.0
          %368 = vst.msk [vmem:[#allocation3 + $0x68] sm:$0xff] %vm338, 0.0
          %369 = vst.msk [vmem:[#allocation3 + $0x70] sm:$0xff] %vm338, 0.0
          %370 = vst.msk [vmem:[#allocation3 + $0x78] sm:$0xff] %vm338, 0.0
          %371 = vst [vmem:[#allocation4] sm:$0xff] 0.0
          %372 = vst [vmem:[#allocation4 + $0x8] sm:$0xff] 0.0
          %373 = vst [vmem:[#allocation4 + $0x10] sm:$0xff] 0.0
          %374 = vst [vmem:[#allocation4 + $0x18] sm:$0xff] 0.0
          %375 = vst [vmem:[#allocation4 + $0x20] sm:$0xff] 0.0
          %376 = vst [vmem:[#allocation4 + $0x28] sm:$0xff] 0.0
          %377 = vst [vmem:[#allocation4 + $0x30] sm:$0xff] 0.0
          %378 = vst [vmem:[#allocation4 + $0x38] sm:$0xff] 0.0
          %379 = vst [vmem:[#allocation4 + $0x40] sm:$0xff] 0.0
          %380 = vst [vmem:[#allocation4 + $0x48] sm:$0xff] 0.0
          %381 = vst [vmem:[#allocation4 + $0x50] sm:$0xff] 0.0
          %382 = vst [vmem:[#allocation4 + $0x58] sm:$0xff] 0.0
          %383 = vst [vmem:[#allocation4 + $0x60] sm:$0xff] 0.0
          %384 = vst [vmem:[#allocation4 + $0x68] sm:$0xff] 0.0
          %385 = vst [vmem:[#allocation4 + $0x70] sm:$0xff] 0.0
          %386 = vst [vmem:[#allocation4 + $0x78] sm:$0xff] 0.0
        $region44: #{xformers_attention_pallas.3} parent=39 // pred_fallthru
          _
        %v387 = vld [vmem:[%s310] sm:$0xf]
        %v388 = vld [vmem:[%s310 + $0x4] sm:$0xf]
        %v389 = vld [vmem:[%s310 + $0x8] sm:$0xf]
        %v390 = vld [vmem:[%s310 + $0xc] sm:$0xf]
        %v391 = vld [vmem:[%s310 + $0x10] sm:$0xf]
        %v392 = vld [vmem:[%s310 + $0x14] sm:$0xf]
        %v393 = vld [vmem:[%s310 + $0x18] sm:$0xf]
        %v394 = vld [vmem:[%s310 + $0x1c] sm:$0xf]
        %v395 = vld [vmem:[%s310 + $0x20] sm:$0xf]
        %v396 = vld [vmem:[%s310 + $0x24] sm:$0xf]
        %v397 = vld [vmem:[%s310 + $0x28] sm:$0xf]
        %v398 = vld [vmem:[%s310 + $0x2c] sm:$0xf]
        %v399 = vld [vmem:[%s310 + $0x30] sm:$0xf]
        %v400 = vld [vmem:[%s310 + $0x34] sm:$0xf]
        %v401 = vld [vmem:[%s310 + $0x38] sm:$0xf]
        %v402 = vld [vmem:[%s310 + $0x3c] sm:$0xf]
        %v403 = vld [vmem:[%s320] sm:$0xf]
        %v404 = vld [vmem:[%s320 + $0x4] sm:$0xf]
        %v405 = vld [vmem:[%s320 + $0x8] sm:$0xf]
        %v406 = vld [vmem:[%s320 + $0xc] sm:$0xf]
        %v407 = vld [vmem:[%s320 + $0x10] sm:$0xf]
        %v408 = vld [vmem:[%s320 + $0x14] sm:$0xf]
        %v409 = vld [vmem:[%s320 + $0x18] sm:$0xf]
        %v410 = vld [vmem:[%s320 + $0x1c] sm:$0xf]
        %v411 = vld [vmem:[%s320 + $0x20] sm:$0xf]
        %v412 = vld [vmem:[%s320 + $0x24] sm:$0xf]
        %v413 = vld [vmem:[%s320 + $0x28] sm:$0xf]
        %v414 = vld [vmem:[%s320 + $0x2c] sm:$0xf]
        %v415 = vld [vmem:[%s320 + $0x30] sm:$0xf]
        %v416 = vld [vmem:[%s320 + $0x34] sm:$0xf]
        %v417 = vld [vmem:[%s320 + $0x38] sm:$0xf]
        %v418 = vld [vmem:[%s320 + $0x3c] sm:$0xf]
        %v435 = vunpack.c.l.b16 %v387
        %v436 = vunpack.c.l.b16 %v388
        %v437 = vunpack.c.l.b16 %v389
        %v438 = vunpack.c.l.b16 %v390
        %v439 = vunpack.c.l.b16 %v391
        %v440 = vunpack.c.l.b16 %v392
        %v441 = vunpack.c.l.b16 %v393
        %v442 = vunpack.c.l.b16 %v394
        %v443 = vunpack.c.l.b16 %v395
        %v444 = vunpack.c.l.b16 %v396
        %v445 = vunpack.c.l.b16 %v397
        %v446 = vunpack.c.l.b16 %v398
        %v447 = vunpack.c.l.b16 %v399
        %v448 = vunpack.c.l.b16 %v400
        %v449 = vunpack.c.l.b16 %v401
        %v450 = vunpack.c.l.b16 %v402
        %v451 = vpack.c.b16 %v436, %v435
        %v452 = vpack.c.b16 %v438, %v437
        %v453 = vpack.c.b16 %v440, %v439
        %v454 = vpack.c.b16 %v442, %v441
        %v455 = vpack.c.b16 %v444, %v443
        %v456 = vpack.c.b16 %v446, %v445
        %v457 = vpack.c.b16 %v448, %v447
        %v458 = vpack.c.b16 %v450, %v449
        %v483 = vunpack.c.l.b16 %v403
        %v484 = vunpack.c.l.b16 %v404
        %v485 = vunpack.c.l.b16 %v405
        %v486 = vunpack.c.l.b16 %v406
        %v487 = vunpack.c.l.b16 %v407
        %v488 = vunpack.c.l.b16 %v408
        %v489 = vunpack.c.l.b16 %v409
        %v490 = vunpack.c.l.b16 %v410
        %v491 = vunpack.c.l.b16 %v411
        %v492 = vunpack.c.l.b16 %v412
        %v493 = vunpack.c.l.b16 %v413
        %v494 = vunpack.c.l.b16 %v414
        %v495 = vunpack.c.l.b16 %v415
        %v496 = vunpack.c.l.b16 %v416
        %v497 = vunpack.c.l.b16 %v417
        %v498 = vunpack.c.l.b16 %v418
        %v499 = vpack.c.b16 %v484, %v483
        %v500 = vpack.c.b16 %v486, %v485
        %v501 = vpack.c.b16 %v488, %v487
        %v502 = vpack.c.b16 %v490, %v489
        %v503 = vpack.c.b16 %v492, %v491
        %v504 = vpack.c.b16 %v494, %v493
        %v505 = vpack.c.b16 %v496, %v495
        %v506 = vpack.c.b16 %v498, %v497
        %515 = vmatprep.subr.bf16.mxu0 0
        %516 = vmatpush1.bf16.xpose.msra.mxu0 %v499
        %517 = vmatprep.subr.bf16.mxu0 0
        %518 = vmatpush1.bf16.xpose.msra.mxu0 %v500
        %519 = vmatprep.subr.bf16.mxu0 0
        %520 = vmatpush1.bf16.xpose.msra.mxu0 %v501
        %521 = vmatprep.subr.bf16.mxu0 0
        %522 = vmatpush1.bf16.xpose.msra.mxu0 %v502
        %523 = vmatprep.subr.bf16.mxu0 0
        %524 = vmatpush1.bf16.xpose.msra.mxu0 %v503
        %525 = vmatprep.subr.bf16.mxu0 0
        %526 = vmatpush1.bf16.xpose.msra.mxu0 %v504
        %527 = vmatprep.subr.bf16.mxu0 0
        %528 = vmatpush1.bf16.xpose.msra.mxu0 %v505
        %529 = vmatprep.subr.bf16.mxu0 0
        %530 = vmatpush1.bf16.xpose.msra.mxu0 %v506
        %531 = vmatprep.subr.bf16.mxu0 0
        %532 = vmatpush1.bf16.xpose.msra.mxu0 0
        %533 = vmatprep.subr.bf16.mxu0 0
        %534 = vmatpush1.bf16.xpose.msra.mxu0 0
        %535 = vmatprep.subr.bf16.mxu0 0
        %536 = vmatpush1.bf16.xpose.msra.mxu0 0
        %537 = vmatprep.subr.bf16.mxu0 0
        %538 = vmatpush1.bf16.xpose.msra.mxu0 0
        %539 = vmatprep.subr.bf16.mxu0 0
        %540 = vmatpush1.bf16.xpose.msra.mxu0 0
        %541 = vmatprep.subr.bf16.mxu0 0
        %542 = vmatpush1.bf16.xpose.msra.mxu0 0
        %543 = vmatprep.subr.bf16.mxu0 0
        %544 = vmatpush1.bf16.xpose.msra.mxu0 0
        %545 = vmatprep.subr.bf16.mxu0 0
        %546 = vmatpush1.bf16.xpose.msra.mxu0 0
        %547 = vmatprep.mubr.bf16.mxu0 0
        %548 = vmatmul.mubr.bf16.gmra.mrb[0].mxu0 %v451
        %v549 = vpop.f32.mrb[0].mxu0
        %v550 = vadd.f32 0.0, %v549
        %v551 = vpop.f32.mrb[0].mxu0
        %v552 = vpop.f32.mrb[0].mxu0
        %v553 = vadd.f32 0.0, %v552
        %v554 = vpop.f32.mrb[0].mxu0
        %555 = vmatprep.mubr.bf16.mxu0 0
        %556 = vmatmul.mubr.bf16.gmra.mrb[0].mxu0 %v452
        %v557 = vpop.f32.mrb[0].mxu0
        %v558 = vadd.f32 0.0, %v557
        %v559 = vpop.f32.mrb[0].mxu0
        %v560 = vpop.f32.mrb[0].mxu0
        %v561 = vadd.f32 0.0, %v560
        %v562 = vpop.f32.mrb[0].mxu0
        %563 = vmatprep.mubr.bf16.mxu0 0
        %564 = vmatmul.mubr.bf16.gmra.mrb[0].mxu0 %v453
        %v565 = vpop.f32.mrb[0].mxu0
        %v566 = vadd.f32 0.0, %v565
        %v567 = vpop.f32.mrb[0].mxu0
        %v568 = vpop.f32.mrb[0].mxu0
        %v569 = vadd.f32 0.0, %v568
        %v570 = vpop.f32.mrb[0].mxu0
        %571 = vmatprep.mubr.bf16.mxu0 0
        %572 = vmatmul.mubr.bf16.gmra.mrb[0].mxu0 %v454
        %v573 = vpop.f32.mrb[0].mxu0
        %v574 = vadd.f32 0.0, %v573
        %v575 = vpop.f32.mrb[0].mxu0
        %v576 = vpop.f32.mrb[0].mxu0
        %v577 = vadd.f32 0.0, %v576
        %v578 = vpop.f32.mrb[0].mxu0
        %579 = vmatprep.mubr.bf16.mxu0 0
        %580 = vmatmul.mubr.bf16.gmra.mrb[0].mxu0 %v455
        %v581 = vpop.f32.mrb[0].mxu0
        %v582 = vadd.f32 0.0, %v581
        %v583 = vpop.f32.mrb[0].mxu0
        %v584 = vpop.f32.mrb[0].mxu0
        %v585 = vadd.f32 0.0, %v584
        %v586 = vpop.f32.mrb[0].mxu0
        %587 = vmatprep.mubr.bf16.mxu0 0
        %588 = vmatmul.mubr.bf16.gmra.mrb[0].mxu0 %v456
        %v589 = vpop.f32.mrb[0].mxu0
        %v590 = vadd.f32 0.0, %v589
        %v591 = vpop.f32.mrb[0].mxu0
        %v592 = vpop.f32.mrb[0].mxu0
        %v593 = vadd.f32 0.0, %v592
        %v594 = vpop.f32.mrb[0].mxu0
        %595 = vmatprep.mubr.bf16.mxu0 0
        %596 = vmatmul.mubr.bf16.gmra.mrb[0].mxu0 %v457
        %v597 = vpop.f32.mrb[0].mxu0
        %v598 = vadd.f32 0.0, %v597
        %v599 = vpop.f32.mrb[0].mxu0
        %v600 = vpop.f32.mrb[0].mxu0
        %v601 = vadd.f32 0.0, %v600
        %v602 = vpop.f32.mrb[0].mxu0
        %603 = vmatprep.mubr.bf16.mxu0 0
        %604 = vmatmul.mubr.bf16.gmra.mrb[0].mxu0 %v458
        %v605 = vpop.f32.mrb[0].mxu0
        %v606 = vadd.f32 0.0, %v605
        %v607 = vpop.f32.mrb[0].mxu0
        %v608 = vpop.f32.mrb[0].mxu0
        %v609 = vadd.f32 0.0, %v608
        %v610 = vpop.f32.mrb[0].mxu0
        %611 = vdwg.mxu0
        %v612 = vld [vmem:[#allocation2] sm:$0xff]
        %v613 = vld [vmem:[#allocation2 + $0x8] sm:$0xff]
        %v614 = vld [vmem:[#allocation2 + $0x10] sm:$0xff]
        %v615 = vld [vmem:[#allocation2 + $0x18] sm:$0xff]
        %v616 = vld [vmem:[#allocation2 + $0x20] sm:$0xff]
        %v617 = vld [vmem:[#allocation2 + $0x28] sm:$0xff]
        %v618 = vld [vmem:[#allocation2 + $0x30] sm:$0xff]
        %v619 = vld [vmem:[#allocation2 + $0x38] sm:$0xff]
        %v620 = vld [vmem:[#allocation2 + $0x40] sm:$0xff]
        %v621 = vld [vmem:[#allocation2 + $0x48] sm:$0xff]
        %v622 = vld [vmem:[#allocation2 + $0x50] sm:$0xff]
        %v623 = vld [vmem:[#allocation2 + $0x58] sm:$0xff]
        %v624 = vld [vmem:[#allocation2 + $0x60] sm:$0xff]
        %v625 = vld [vmem:[#allocation2 + $0x68] sm:$0xff]
        %v626 = vld [vmem:[#allocation2 + $0x70] sm:$0xff]
        %v627 = vld [vmem:[#allocation2 + $0x78] sm:$0xff]
        %628 = vmax.xlane.f32.xlu0 %v550
        %v629 = vpop.xlane.xlu0 %628
        %630 = vmax.xlane.f32.xlu0 %v553
        %v631 = vpop.xlane.xlu0 %630
        %632 = vmax.xlane.f32.xlu0 %v558
        %v633 = vpop.xlane.xlu0 %632
        %634 = vmax.xlane.f32.xlu0 %v561
        %v635 = vpop.xlane.xlu0 %634
        %636 = vmax.xlane.f32.xlu0 %v566
        %v637 = vpop.xlane.xlu0 %636
        %638 = vmax.xlane.f32.xlu0 %v569
        %v639 = vpop.xlane.xlu0 %638
        %640 = vmax.xlane.f32.xlu0 %v574
        %v641 = vpop.xlane.xlu0 %640
        %642 = vmax.xlane.f32.xlu0 %v577
        %v643 = vpop.xlane.xlu0 %642
        %644 = vmax.xlane.f32.xlu0 %v582
        %v645 = vpop.xlane.xlu0 %644
        %646 = vmax.xlane.f32.xlu0 %v585
        %v647 = vpop.xlane.xlu0 %646
        %648 = vmax.xlane.f32.xlu0 %v590
        %v649 = vpop.xlane.xlu0 %648
        %650 = vmax.xlane.f32.xlu0 %v593
        %v651 = vpop.xlane.xlu0 %650
        %652 = vmax.xlane.f32.xlu0 %v598
        %v653 = vpop.xlane.xlu0 %652
        %654 = vmax.xlane.f32.xlu0 %v601
        %v655 = vpop.xlane.xlu0 %654
        %656 = vmax.xlane.f32.xlu0 %v606
        %v657 = vpop.xlane.xlu0 %656
        %658 = vmax.xlane.f32.xlu0 %v609
        %v659 = vpop.xlane.xlu0 %658
        %v660 = vmax.f32 %v612, %v629
        %v661 = vmax.f32 %v613, %v631
        %v662 = vmax.f32 %v614, %v633
        %v663 = vmax.f32 %v615, %v635
        %v664 = vmax.f32 %v616, %v637
        %v665 = vmax.f32 %v617, %v639
        %v666 = vmax.f32 %v618, %v641
        %v667 = vmax.f32 %v619, %v643
        %v668 = vmax.f32 %v620, %v645
        %v669 = vmax.f32 %v621, %v647
        %v670 = vmax.f32 %v622, %v649
        %v671 = vmax.f32 %v623, %v651
        %v672 = vmax.f32 %v624, %v653
        %v673 = vmax.f32 %v625, %v655
        %v674 = vmax.f32 %v626, %v657
        %v675 = vmax.f32 %v627, %v659
        %v676 = vsub.f32 %v612, %v660
        %v677 = vsub.f32 %v613, %v661
        %v678 = vsub.f32 %v614, %v662
        %v679 = vsub.f32 %v615, %v663
        %v680 = vsub.f32 %v616, %v664
        %v681 = vsub.f32 %v617, %v665
        %v682 = vsub.f32 %v618, %v666
        %v683 = vsub.f32 %v619, %v667
        %v684 = vsub.f32 %v620, %v668
        %v685 = vsub.f32 %v621, %v669
        %v686 = vsub.f32 %v622, %v670
        %v687 = vsub.f32 %v623, %v671
        %v688 = vsub.f32 %v624, %v672
        %v689 = vsub.f32 %v625, %v673
        %v690 = vsub.f32 %v626, %v674
        %v691 = vsub.f32 %v627, %v675
        %v692 = vmul.f32 %v676, 1.442695
        %v693 = vpow.pop %v692
        %v694 = vmul.f32 %v677, 1.442695
        %v695 = vpow.pop %v694
        %v696 = vmul.f32 %v678, 1.442695
        %v697 = vpow.pop %v696
        %v698 = vmul.f32 %v679, 1.442695
        %v699 = vpow.pop %v698
        %v700 = vmul.f32 %v680, 1.442695
        %v701 = vpow.pop %v700
        %v702 = vmul.f32 %v681, 1.442695
        %v703 = vpow.pop %v702
        %v704 = vmul.f32 %v682, 1.442695
        %v705 = vpow.pop %v704
        %v706 = vmul.f32 %v683, 1.442695
        %v707 = vpow.pop %v706
        %v708 = vmul.f32 %v684, 1.442695
        %v709 = vpow.pop %v708
        %v710 = vmul.f32 %v685, 1.442695
        %v711 = vpow.pop %v710
        %v712 = vmul.f32 %v686, 1.442695
        %v713 = vpow.pop %v712
        %v714 = vmul.f32 %v687, 1.442695
        %v715 = vpow.pop %v714
        %v716 = vmul.f32 %v688, 1.442695
        %v717 = vpow.pop %v716
        %v718 = vmul.f32 %v689, 1.442695
        %v719 = vpow.pop %v718
        %v720 = vmul.f32 %v690, 1.442695
        %v721 = vpow.pop %v720
        %v722 = vmul.f32 %v691, 1.442695
        %v723 = vpow.pop %v722
        %725 = vset.pattern.permute.xlu0 0
        %726 = vperm.xlu0 %725, %v660
        %v727 = vpop.permute.xlu0 %726
        %730 = vset.pattern.permute.xlu0 0
        %731 = vperm.xlu0 %730, %v661
        %v732 = vpop.permute.xlu0 %731
        %735 = vset.pattern.permute.xlu0 0
        %736 = vperm.xlu0 %735, %v662
        %v737 = vpop.permute.xlu0 %736
        %740 = vset.pattern.permute.xlu0 0
        %741 = vperm.xlu0 %740, %v663
        %v742 = vpop.permute.xlu0 %741
        %745 = vset.pattern.permute.xlu0 0
        %746 = vperm.xlu0 %745, %v664
        %v747 = vpop.permute.xlu0 %746
        %750 = vset.pattern.permute.xlu0 0
        %751 = vperm.xlu0 %750, %v665
        %v752 = vpop.permute.xlu0 %751
        %755 = vset.pattern.permute.xlu0 0
        %756 = vperm.xlu0 %755, %v666
        %v757 = vpop.permute.xlu0 %756
        %760 = vset.pattern.permute.xlu0 0
        %761 = vperm.xlu0 %760, %v667
        %v762 = vpop.permute.xlu0 %761
        %765 = vset.pattern.permute.xlu0 0
        %766 = vperm.xlu0 %765, %v668
        %v767 = vpop.permute.xlu0 %766
        %770 = vset.pattern.permute.xlu0 0
        %771 = vperm.xlu0 %770, %v669
        %v772 = vpop.permute.xlu0 %771
        %775 = vset.pattern.permute.xlu0 0
        %776 = vperm.xlu0 %775, %v670
        %v777 = vpop.permute.xlu0 %776
        %780 = vset.pattern.permute.xlu0 0
        %781 = vperm.xlu0 %780, %v671
        %v782 = vpop.permute.xlu0 %781
        %785 = vset.pattern.permute.xlu0 0
        %786 = vperm.xlu0 %785, %v672
        %v787 = vpop.permute.xlu0 %786
        %790 = vset.pattern.permute.xlu0 0
        %791 = vperm.xlu0 %790, %v673
        %v792 = vpop.permute.xlu0 %791
        %795 = vset.pattern.permute.xlu0 0
        %796 = vperm.xlu0 %795, %v674
        %v797 = vpop.permute.xlu0 %796
        %800 = vset.pattern.permute.xlu0 0
        %801 = vperm.xlu0 %800, %v675
        %v802 = vpop.permute.xlu0 %801
        %v804 = vsub.f32 %v550, %v727
        %v805 = vsub.f32 %v553, %v732
        %v806 = vsub.f32 %v558, %v737
        %v807 = vsub.f32 %v561, %v742
        %v808 = vsub.f32 %v566, %v747
        %v809 = vsub.f32 %v569, %v752
        %v810 = vsub.f32 %v574, %v757
        %v811 = vsub.f32 %v577, %v762
        %v812 = vsub.f32 %v582, %v767
        %v813 = vsub.f32 %v585, %v772
        %v814 = vsub.f32 %v590, %v777
        %v815 = vsub.f32 %v593, %v782
        %v816 = vsub.f32 %v598, %v787
        %v817 = vsub.f32 %v601, %v792
        %v818 = vsub.f32 %v606, %v797
        %v819 = vsub.f32 %v609, %v802
        %v820 = vmul.f32 %v804, 1.442695
        %v821 = vpow.pop %v820
        %v822 = vmul.f32 %v805, 1.442695
        %v823 = vpow.pop %v822
        %v824 = vmul.f32 %v806, 1.442695
        %v825 = vpow.pop %v824
        %v826 = vmul.f32 %v807, 1.442695
        %v827 = vpow.pop %v826
        %v828 = vmul.f32 %v808, 1.442695
        %v829 = vpow.pop %v828
        %v830 = vmul.f32 %v809, 1.442695
        %v831 = vpow.pop %v830
        %v832 = vmul.f32 %v810, 1.442695
        %v833 = vpow.pop %v832
        %v834 = vmul.f32 %v811, 1.442695
        %v835 = vpow.pop %v834
        %v836 = vmul.f32 %v812, 1.442695
        %v837 = vpow.pop %v836
        %v838 = vmul.f32 %v813, 1.442695
        %v839 = vpow.pop %v838
        %v840 = vmul.f32 %v814, 1.442695
        %v841 = vpow.pop %v840
        %v842 = vmul.f32 %v815, 1.442695
        %v843 = vpow.pop %v842
        %v844 = vmul.f32 %v816, 1.442695
        %v845 = vpow.pop %v844
        %v846 = vmul.f32 %v817, 1.442695
        %v847 = vpow.pop %v846
        %v848 = vmul.f32 %v818, 1.442695
        %v849 = vpow.pop %v848
        %v850 = vmul.f32 %v819, 1.442695
        %v851 = vpow.pop %v850
        %v852 = vld [vmem:[#allocation3] sm:$0xff]
        %v853 = vld [vmem:[#allocation3 + $0x8] sm:$0xff]
        %v854 = vld [vmem:[#allocation3 + $0x10] sm:$0xff]
        %v855 = vld [vmem:[#allocation3 + $0x18] sm:$0xff]
        %v856 = vld [vmem:[#allocation3 + $0x20] sm:$0xff]
        %v857 = vld [vmem:[#allocation3 + $0x28] sm:$0xff]
        %v858 = vld [vmem:[#allocation3 + $0x30] sm:$0xff]
        %v859 = vld [vmem:[#allocation3 + $0x38] sm:$0xff]
        %v860 = vld [vmem:[#allocation3 + $0x40] sm:$0xff]
        %v861 = vld [vmem:[#allocation3 + $0x48] sm:$0xff]
        %v862 = vld [vmem:[#allocation3 + $0x50] sm:$0xff]
        %v863 = vld [vmem:[#allocation3 + $0x58] sm:$0xff]
        %v864 = vld [vmem:[#allocation3 + $0x60] sm:$0xff]
        %v865 = vld [vmem:[#allocation3 + $0x68] sm:$0xff]
        %v866 = vld [vmem:[#allocation3 + $0x70] sm:$0xff]
        %v867 = vld [vmem:[#allocation3 + $0x78] sm:$0xff]
        %v868 = vmul.f32 %v693, %v852
        %v869 = vmul.f32 %v695, %v853
        %v870 = vmul.f32 %v697, %v854
        %v871 = vmul.f32 %v699, %v855
        %v872 = vmul.f32 %v701, %v856
        %v873 = vmul.f32 %v703, %v857
        %v874 = vmul.f32 %v705, %v858
        %v875 = vmul.f32 %v707, %v859
        %v876 = vmul.f32 %v709, %v860
        %v877 = vmul.f32 %v711, %v861
        %v878 = vmul.f32 %v713, %v862
        %v879 = vmul.f32 %v715, %v863
        %v880 = vmul.f32 %v717, %v864
        %v881 = vmul.f32 %v719, %v865
        %v882 = vmul.f32 %v721, %v866
        %v883 = vmul.f32 %v723, %v867
        %884 = vadd.xlane.f32.xlu0 %v821
        %v885 = vpop.xlane.xlu0 %884
        %886 = vadd.xlane.f32.xlu0 %v823
        %v887 = vpop.xlane.xlu0 %886
        %888 = vadd.xlane.f32.xlu0 %v825
        %v889 = vpop.xlane.xlu0 %888
        %890 = vadd.xlane.f32.xlu0 %v827
        %v891 = vpop.xlane.xlu0 %890
        %892 = vadd.xlane.f32.xlu0 %v829
        %v893 = vpop.xlane.xlu0 %892
        %894 = vadd.xlane.f32.xlu0 %v831
        %v895 = vpop.xlane.xlu0 %894
        %896 = vadd.xlane.f32.xlu0 %v833
        %v897 = vpop.xlane.xlu0 %896
        %898 = vadd.xlane.f32.xlu0 %v835
        %v899 = vpop.xlane.xlu0 %898
        %900 = vadd.xlane.f32.xlu0 %v837
        %v901 = vpop.xlane.xlu0 %900
        %902 = vadd.xlane.f32.xlu0 %v839
        %v903 = vpop.xlane.xlu0 %902
        %904 = vadd.xlane.f32.xlu0 %v841
        %v905 = vpop.xlane.xlu0 %904
        %906 = vadd.xlane.f32.xlu0 %v843
        %v907 = vpop.xlane.xlu0 %906
        %908 = vadd.xlane.f32.xlu0 %v845
        %v909 = vpop.xlane.xlu0 %908
        %910 = vadd.xlane.f32.xlu0 %v847
        %v911 = vpop.xlane.xlu0 %910
        %912 = vadd.xlane.f32.xlu0 %v849
        %v913 = vpop.xlane.xlu0 %912
        %914 = vadd.xlane.f32.xlu0 %v851
        %v915 = vpop.xlane.xlu0 %914
        %v916 = vadd.f32 %v868, %v885
        %v917 = vadd.f32 %v869, %v887
        %v918 = vadd.f32 %v870, %v889
        %v919 = vadd.f32 %v871, %v891
        %v920 = vadd.f32 %v872, %v893
        %v921 = vadd.f32 %v873, %v895
        %v922 = vadd.f32 %v874, %v897
        %v923 = vadd.f32 %v875, %v899
        %v924 = vadd.f32 %v876, %v901
        %v925 = vadd.f32 %v877, %v903
        %v926 = vadd.f32 %v878, %v905
        %v927 = vadd.f32 %v879, %v907
        %v928 = vadd.f32 %v880, %v909
        %v929 = vadd.f32 %v881, %v911
        %v930 = vadd.f32 %v882, %v913
        %v931 = vadd.f32 %v883, %v915
        %vm932 = vcmask 7168
        %933 = vst.msk [vmem:[#allocation3] sm:$0xff] %vm932, %v916
        %934 = vst.msk [vmem:[#allocation3 + $0x8] sm:$0xff] %vm932, %v917
        %935 = vst.msk [vmem:[#allocation3 + $0x10] sm:$0xff] %vm932, %v918
        %936 = vst.msk [vmem:[#allocation3 + $0x18] sm:$0xff] %vm932, %v919
        %937 = vst.msk [vmem:[#allocation3 + $0x20] sm:$0xff] %vm932, %v920
        %938 = vst.msk [vmem:[#allocation3 + $0x28] sm:$0xff] %vm932, %v921
        %939 = vst.msk [vmem:[#allocation3 + $0x30] sm:$0xff] %vm932, %v922
        %940 = vst.msk [vmem:[#allocation3 + $0x38] sm:$0xff] %vm932, %v923
        %941 = vst.msk [vmem:[#allocation3 + $0x40] sm:$0xff] %vm932, %v924
        %942 = vst.msk [vmem:[#allocation3 + $0x48] sm:$0xff] %vm932, %v925
        %943 = vst.msk [vmem:[#allocation3 + $0x50] sm:$0xff] %vm932, %v926
        %944 = vst.msk [vmem:[#allocation3 + $0x58] sm:$0xff] %vm932, %v927
        %945 = vst.msk [vmem:[#allocation3 + $0x60] sm:$0xff] %vm932, %v928
        %946 = vst.msk [vmem:[#allocation3 + $0x68] sm:$0xff] %vm932, %v929
        %947 = vst.msk [vmem:[#allocation3 + $0x70] sm:$0xff] %vm932, %v930
        %948 = vst.msk [vmem:[#allocation3 + $0x78] sm:$0xff] %vm932, %v931
        %v949 = vld [vmem:[#allocation4] sm:$0xff]
        %v950 = vld [vmem:[#allocation4 + $0x8] sm:$0xff]
        %v951 = vld [vmem:[#allocation4 + $0x10] sm:$0xff]
        %v952 = vld [vmem:[#allocation4 + $0x18] sm:$0xff]
        %v953 = vld [vmem:[#allocation4 + $0x20] sm:$0xff]
        %v954 = vld [vmem:[#allocation4 + $0x28] sm:$0xff]
        %v955 = vld [vmem:[#allocation4 + $0x30] sm:$0xff]
        %v956 = vld [vmem:[#allocation4 + $0x38] sm:$0xff]
        %v957 = vld [vmem:[#allocation4 + $0x40] sm:$0xff]
        %v958 = vld [vmem:[#allocation4 + $0x48] sm:$0xff]
        %v959 = vld [vmem:[#allocation4 + $0x50] sm:$0xff]
        %v960 = vld [vmem:[#allocation4 + $0x58] sm:$0xff]
        %v961 = vld [vmem:[#allocation4 + $0x60] sm:$0xff]
        %v962 = vld [vmem:[#allocation4 + $0x68] sm:$0xff]
        %v963 = vld [vmem:[#allocation4 + $0x70] sm:$0xff]
        %v964 = vld [vmem:[#allocation4 + $0x78] sm:$0xff]
        %966 = vset.pattern.permute.xlu0 0
        %967 = vperm.xlu0 %966, %v693
        %v968 = vpop.permute.xlu0 %967
        %971 = vset.pattern.permute.xlu0 0
        %972 = vperm.xlu0 %971, %v695
        %v973 = vpop.permute.xlu0 %972
        %976 = vset.pattern.permute.xlu0 0
        %977 = vperm.xlu0 %976, %v697
        %v978 = vpop.permute.xlu0 %977
        %981 = vset.pattern.permute.xlu0 0
        %982 = vperm.xlu0 %981, %v699
        %v983 = vpop.permute.xlu0 %982
        %986 = vset.pattern.permute.xlu0 0
        %987 = vperm.xlu0 %986, %v701
        %v988 = vpop.permute.xlu0 %987
        %991 = vset.pattern.permute.xlu0 0
        %992 = vperm.xlu0 %991, %v703
        %v993 = vpop.permute.xlu0 %992
        %996 = vset.pattern.permute.xlu0 0
        %997 = vperm.xlu0 %996, %v705
        %v998 = vpop.permute.xlu0 %997
        %1001 = vset.pattern.permute.xlu0 0
        %1002 = vperm.xlu0 %1001, %v707
        %v1003 = vpop.permute.xlu0 %1002
        %1006 = vset.pattern.permute.xlu0 0
        %1007 = vperm.xlu0 %1006, %v709
        %v1008 = vpop.permute.xlu0 %1007
        %1011 = vset.pattern.permute.xlu0 0
        %1012 = vperm.xlu0 %1011, %v711
        %v1013 = vpop.permute.xlu0 %1012
        %1016 = vset.pattern.permute.xlu0 0
        %1017 = vperm.xlu0 %1016, %v713
        %v1018 = vpop.permute.xlu0 %1017
        %1021 = vset.pattern.permute.xlu0 0
        %1022 = vperm.xlu0 %1021, %v715
        %v1023 = vpop.permute.xlu0 %1022
        %1026 = vset.pattern.permute.xlu0 0
        %1027 = vperm.xlu0 %1026, %v717
        %v1028 = vpop.permute.xlu0 %1027
        %1031 = vset.pattern.permute.xlu0 0
        %1032 = vperm.xlu0 %1031, %v719
        %v1033 = vpop.permute.xlu0 %1032
        %1036 = vset.pattern.permute.xlu0 0
        %1037 = vperm.xlu0 %1036, %v721
        %v1038 = vpop.permute.xlu0 %1037
        %1041 = vset.pattern.permute.xlu0 0
        %1042 = vperm.xlu0 %1041, %v723
        %v1043 = vpop.permute.xlu0 %1042
        %v1045 = vmul.f32 %v968, %v949
        %v1046 = vmul.f32 %v973, %v950
        %v1047 = vmul.f32 %v978, %v951
        %v1048 = vmul.f32 %v983, %v952
        %v1049 = vmul.f32 %v988, %v953
        %v1050 = vmul.f32 %v993, %v954
        %v1051 = vmul.f32 %v998, %v955
        %v1052 = vmul.f32 %v1003, %v956
        %v1053 = vmul.f32 %v1008, %v957
        %v1054 = vmul.f32 %v1013, %v958
        %v1055 = vmul.f32 %v1018, %v959
        %v1056 = vmul.f32 %v1023, %v960
        %v1057 = vmul.f32 %v1028, %v961
        %v1058 = vmul.f32 %v1033, %v962
        %v1059 = vmul.f32 %v1038, %v963
        %v1060 = vmul.f32 %v1043, %v964
        %v1061 = vpack.c.bf16 %v823, %v821
        %v1062 = vpack.c.bf16 %v827, %v825
        %v1063 = vpack.c.bf16 %v831, %v829
        %v1064 = vpack.c.bf16 %v835, %v833
        %v1065 = vpack.c.bf16 %v839, %v837
        %v1066 = vpack.c.bf16 %v843, %v841
        %v1067 = vpack.c.bf16 %v847, %v845
        %v1068 = vpack.c.bf16 %v851, %v849
        %v1069 = vld [vmem:[%s330] sm:$0xf]
        %v1070 = vld [vmem:[%s330 + $0x4] sm:$0xf]
        %v1071 = vld [vmem:[%s330 + $0x8] sm:$0xf]
        %v1072 = vld [vmem:[%s330 + $0xc] sm:$0xf]
        %v1073 = vld [vmem:[%s330 + $0x10] sm:$0xf]
        %v1074 = vld [vmem:[%s330 + $0x14] sm:$0xf]
        %v1075 = vld [vmem:[%s330 + $0x18] sm:$0xf]
        %v1076 = vld [vmem:[%s330 + $0x1c] sm:$0xf]
        %v1077 = vld [vmem:[%s330 + $0x20] sm:$0xf]
        %v1078 = vld [vmem:[%s330 + $0x24] sm:$0xf]
        %v1079 = vld [vmem:[%s330 + $0x28] sm:$0xf]
        %v1080 = vld [vmem:[%s330 + $0x2c] sm:$0xf]
        %v1081 = vld [vmem:[%s330 + $0x30] sm:$0xf]
        %v1082 = vld [vmem:[%s330 + $0x34] sm:$0xf]
        %v1083 = vld [vmem:[%s330 + $0x38] sm:$0xf]
        %v1084 = vld [vmem:[%s330 + $0x3c] sm:$0xf]
        %v1101 = vunpack.c.l.b16 %v1069
        %v1102 = vunpack.c.l.b16 %v1070
        %v1103 = vunpack.c.l.b16 %v1071
        %v1104 = vunpack.c.l.b16 %v1072
        %v1105 = vunpack.c.l.b16 %v1073
        %v1106 = vunpack.c.l.b16 %v1074
        %v1107 = vunpack.c.l.b16 %v1075
        %v1108 = vunpack.c.l.b16 %v1076
        %v1109 = vunpack.c.l.b16 %v1077
        %v1110 = vunpack.c.l.b16 %v1078
        %v1111 = vunpack.c.l.b16 %v1079
        %v1112 = vunpack.c.l.b16 %v1080
        %v1113 = vunpack.c.l.b16 %v1081
        %v1114 = vunpack.c.l.b16 %v1082
        %v1115 = vunpack.c.l.b16 %v1083
        %v1116 = vunpack.c.l.b16 %v1084
        %v1117 = vpack.c.b16 %v1102, %v1101
        %v1118 = vpack.c.b16 %v1104, %v1103
        %v1119 = vpack.c.b16 %v1106, %v1105
        %v1120 = vpack.c.b16 %v1108, %v1107
        %v1121 = vpack.c.b16 %v1110, %v1109
        %v1122 = vpack.c.b16 %v1112, %v1111
        %v1123 = vpack.c.b16 %v1114, %v1113
        %v1124 = vpack.c.b16 %v1116, %v1115
        %1133 = vmatprep.subr.bf16.mxu0 0
        %1134 = vmatpush1.bf16.msra.mxu0 %v1117
        %1135 = vmatprep.subr.bf16.mxu0 0
        %1136 = vmatpush1.bf16.msra.mxu0 %v1118
        %1137 = vmatprep.subr.bf16.mxu0 0
        %1138 = vmatpush1.bf16.msra.mxu0 %v1119
        %1139 = vmatprep.subr.bf16.mxu0 0
        %1140 = vmatpush1.bf16.msra.mxu0 %v1120
        %1141 = vmatprep.subr.bf16.mxu0 0
        %1142 = vmatpush1.bf16.msra.mxu0 %v1121
        %1143 = vmatprep.subr.bf16.mxu0 0
        %1144 = vmatpush1.bf16.msra.mxu0 %v1122
        %1145 = vmatprep.subr.bf16.mxu0 0
        %1146 = vmatpush1.bf16.msra.mxu0 %v1123
        %1147 = vmatprep.subr.bf16.mxu0 0
        %1148 = vmatpush1.bf16.msra.mxu0 %v1124
        %1149 = vmatprep.subr.bf16.mxu0 0
        %1150 = vmatpush1.bf16.msra.mxu0 0
        %1151 = vmatprep.subr.bf16.mxu0 0
        %1152 = vmatpush1.bf16.msra.mxu0 0
        %1153 = vmatprep.subr.bf16.mxu0 0
        %1154 = vmatpush1.bf16.msra.mxu0 0
        %1155 = vmatprep.subr.bf16.mxu0 0
        %1156 = vmatpush1.bf16.msra.mxu0 0
        %1157 = vmatprep.subr.bf16.mxu0 0
        %1158 = vmatpush1.bf16.msra.mxu0 0
        %1159 = vmatprep.subr.bf16.mxu0 0
        %1160 = vmatpush1.bf16.msra.mxu0 0
        %1161 = vmatprep.subr.bf16.mxu0 0
        %1162 = vmatpush1.bf16.msra.mxu0 0
        %1163 = vmatprep.subr.bf16.mxu0 0
        %1164 = vmatpush1.bf16.msra.mxu0 0
        %1165 = vmatprep.mubr.bf16.mxu0 0
        %1166 = vmatmul.mubr.bf16.gmra.mrb[0].mxu0 %v1061
        %v1167 = vpop.f32.mrb[0].mxu0
        %v1168 = vadd.f32 0.0, %v1167
        %v1169 = vpop.f32.mrb[0].mxu0
        %v1170 = vpop.f32.mrb[0].mxu0
        %v1171 = vadd.f32 0.0, %v1170
        %v1172 = vpop.f32.mrb[0].mxu0
        %1173 = vmatprep.mubr.bf16.mxu0 0
        %1174 = vmatmul.mubr.bf16.gmra.mrb[0].mxu0 %v1062
        %v1175 = vpop.f32.mrb[0].mxu0
        %v1176 = vadd.f32 0.0, %v1175
        %v1177 = vpop.f32.mrb[0].mxu0
        %v1178 = vpop.f32.mrb[0].mxu0
        %v1179 = vadd.f32 0.0, %v1178
        %v1180 = vpop.f32.mrb[0].mxu0
        %1181 = vmatprep.mubr.bf16.mxu0 0
        %1182 = vmatmul.mubr.bf16.gmra.mrb[0].mxu0 %v1063
        %v1183 = vpop.f32.mrb[0].mxu0
        %v1184 = vadd.f32 0.0, %v1183
        %v1185 = vpop.f32.mrb[0].mxu0
        %v1186 = vpop.f32.mrb[0].mxu0
        %v1187 = vadd.f32 0.0, %v1186
        %v1188 = vpop.f32.mrb[0].mxu0
        %1189 = vmatprep.mubr.bf16.mxu0 0
        %1190 = vmatmul.mubr.bf16.gmra.mrb[0].mxu0 %v1064
        %v1191 = vpop.f32.mrb[0].mxu0
        %v1192 = vadd.f32 0.0, %v1191
        %v1193 = vpop.f32.mrb[0].mxu0
        %v1194 = vpop.f32.mrb[0].mxu0
        %v1195 = vadd.f32 0.0, %v1194
        %v1196 = vpop.f32.mrb[0].mxu0
        %1197 = vmatprep.mubr.bf16.mxu0 0
        %1198 = vmatmul.mubr.bf16.gmra.mrb[0].mxu0 %v1065
        %v1199 = vpop.f32.mrb[0].mxu0
        %v1200 = vadd.f32 0.0, %v1199
        %v1201 = vpop.f32.mrb[0].mxu0
        %v1202 = vpop.f32.mrb[0].mxu0
        %v1203 = vadd.f32 0.0, %v1202
        %v1204 = vpop.f32.mrb[0].mxu0
        %1205 = vmatprep.mubr.bf16.mxu0 0
        %1206 = vmatmul.mubr.bf16.gmra.mrb[0].mxu0 %v1066
        %v1207 = vpop.f32.mrb[0].mxu0
        %v1208 = vadd.f32 0.0, %v1207
        %v1209 = vpop.f32.mrb[0].mxu0
        %v1210 = vpop.f32.mrb[0].mxu0
        %v1211 = vadd.f32 0.0, %v1210
        %v1212 = vpop.f32.mrb[0].mxu0
        %1213 = vmatprep.mubr.bf16.mxu0 0
        %1214 = vmatmul.mubr.bf16.gmra.mrb[0].mxu0 %v1067
        %v1215 = vpop.f32.mrb[0].mxu0
        %v1216 = vadd.f32 0.0, %v1215
        %v1217 = vpop.f32.mrb[0].mxu0
        %v1218 = vpop.f32.mrb[0].mxu0
        %v1219 = vadd.f32 0.0, %v1218
        %v1220 = vpop.f32.mrb[0].mxu0
        %1221 = vmatprep.mubr.bf16.mxu0 0
        %1222 = vmatmul.mubr.bf16.gmra.mrb[0].mxu0 %v1068
        %v1223 = vpop.f32.mrb[0].mxu0
        %v1224 = vadd.f32 0.0, %v1223
        %v1225 = vpop.f32.mrb[0].mxu0
        %v1226 = vpop.f32.mrb[0].mxu0
        %v1227 = vadd.f32 0.0, %v1226
        %v1228 = vpop.f32.mrb[0].mxu0
        %1229 = vdwg.mxu0
        %v1230 = vadd.f32 %v1045, %v1168
        %v1231 = vadd.f32 %v1046, %v1171
        %v1232 = vadd.f32 %v1047, %v1176
        %v1233 = vadd.f32 %v1048, %v1179
        %v1234 = vadd.f32 %v1049, %v1184
        %v1235 = vadd.f32 %v1050, %v1187
        %v1236 = vadd.f32 %v1051, %v1192
        %v1237 = vadd.f32 %v1052, %v1195
        %v1238 = vadd.f32 %v1053, %v1200
        %v1239 = vadd.f32 %v1054, %v1203
        %v1240 = vadd.f32 %v1055, %v1208
        %v1241 = vadd.f32 %v1056, %v1211
        %v1242 = vadd.f32 %v1057, %v1216
        %v1243 = vadd.f32 %v1058, %v1219
        %v1244 = vadd.f32 %v1059, %v1224
        %v1245 = vadd.f32 %v1060, %v1227
        %1246 = vst [vmem:[#allocation4] sm:$0xff] %v1230
        %1247 = vst [vmem:[#allocation4 + $0x8] sm:$0xff] %v1231
        %1248 = vst [vmem:[#allocation4 + $0x10] sm:$0xff] %v1232
        %1249 = vst [vmem:[#allocation4 + $0x18] sm:$0xff] %v1233
        %1250 = vst [vmem:[#allocation4 + $0x20] sm:$0xff] %v1234
        %1251 = vst [vmem:[#allocation4 + $0x28] sm:$0xff] %v1235
        %1252 = vst [vmem:[#allocation4 + $0x30] sm:$0xff] %v1236
        %1253 = vst [vmem:[#allocation4 + $0x38] sm:$0xff] %v1237
        %1254 = vst [vmem:[#allocation4 + $0x40] sm:$0xff] %v1238
        %1255 = vst [vmem:[#allocation4 + $0x48] sm:$0xff] %v1239
        %1256 = vst [vmem:[#allocation4 + $0x50] sm:$0xff] %v1240
        %1257 = vst [vmem:[#allocation4 + $0x58] sm:$0xff] %v1241
        %1258 = vst [vmem:[#allocation4 + $0x60] sm:$0xff] %v1242
        %1259 = vst [vmem:[#allocation4 + $0x68] sm:$0xff] %v1243
        %1260 = vst [vmem:[#allocation4 + $0x70] sm:$0xff] %v1244
        %1261 = vst [vmem:[#allocation4 + $0x78] sm:$0xff] %v1245
        %1262 = vst.msk [vmem:[#allocation2] sm:$0xff] %vm932, %v660
        %1263 = vst.msk [vmem:[#allocation2 + $0x8] sm:$0xff] %vm932, %v661
        %1264 = vst.msk [vmem:[#allocation2 + $0x10] sm:$0xff] %vm932, %v662
        %1265 = vst.msk [vmem:[#allocation2 + $0x18] sm:$0xff] %vm932, %v663
        %1266 = vst.msk [vmem:[#allocation2 + $0x20] sm:$0xff] %vm932, %v664
        %1267 = vst.msk [vmem:[#allocation2 + $0x28] sm:$0xff] %vm932, %v665
        %1268 = vst.msk [vmem:[#allocation2 + $0x30] sm:$0xff] %vm932, %v666
        %1269 = vst.msk [vmem:[#allocation2 + $0x38] sm:$0xff] %vm932, %v667
        %1270 = vst.msk [vmem:[#allocation2 + $0x40] sm:$0xff] %vm932, %v668
        %1271 = vst.msk [vmem:[#allocation2 + $0x48] sm:$0xff] %vm932, %v669
        %1272 = vst.msk [vmem:[#allocation2 + $0x50] sm:$0xff] %vm932, %v670
        %1273 = vst.msk [vmem:[#allocation2 + $0x58] sm:$0xff] %vm932, %v671
        %1274 = vst.msk [vmem:[#allocation2 + $0x60] sm:$0xff] %vm932, %v672
        %1275 = vst.msk [vmem:[#allocation2 + $0x68] sm:$0xff] %vm932, %v673
        %1276 = vst.msk [vmem:[#allocation2 + $0x70] sm:$0xff] %vm932, %v674
        %1277 = vst.msk [vmem:[#allocation2 + $0x78] sm:$0xff] %vm932, %v675
        %p1278 = scmp.eq.s32.totalorder %s26, 1
        // Predicated region
        $region45: #{xformers_attention_pallas.3} parent=39 // pred_check
          %p1279 = pneg %p1278
        $region46: #{xformers_attention_pallas.3} parent=39 // pred_check_branch
          %1281 = sbr.rel (%p1279) target = $region48
        $region47: #{xformers_attention_pallas.3} parent=39 // pred_region
          %v1282 = vld [vmem:[#allocation4] sm:$0xff]
          %v1283 = vld [vmem:[#allocation4 + $0x8] sm:$0xff]
          %v1284 = vld [vmem:[#allocation4 + $0x10] sm:$0xff]
          %v1285 = vld [vmem:[#allocation4 + $0x18] sm:$0xff]
          %v1286 = vld [vmem:[#allocation4 + $0x20] sm:$0xff]
          %v1287 = vld [vmem:[#allocation4 + $0x28] sm:$0xff]
          %v1288 = vld [vmem:[#allocation4 + $0x30] sm:$0xff]
          %v1289 = vld [vmem:[#allocation4 + $0x38] sm:$0xff]
          %v1290 = vld [vmem:[#allocation4 + $0x40] sm:$0xff]
          %v1291 = vld [vmem:[#allocation4 + $0x48] sm:$0xff]
          %v1292 = vld [vmem:[#allocation4 + $0x50] sm:$0xff]
          %v1293 = vld [vmem:[#allocation4 + $0x58] sm:$0xff]
          %v1294 = vld [vmem:[#allocation4 + $0x60] sm:$0xff]
          %v1295 = vld [vmem:[#allocation4 + $0x68] sm:$0xff]
          %v1296 = vld [vmem:[#allocation4 + $0x70] sm:$0xff]
          %v1297 = vld [vmem:[#allocation4 + $0x78] sm:$0xff]
          %v1298 = vld [vmem:[#allocation3] sm:$0xff]
          %v1299 = vld [vmem:[#allocation3 + $0x8] sm:$0xff]
          %v1300 = vld [vmem:[#allocation3 + $0x10] sm:$0xff]
          %v1301 = vld [vmem:[#allocation3 + $0x18] sm:$0xff]
          %v1302 = vld [vmem:[#allocation3 + $0x20] sm:$0xff]
          %v1303 = vld [vmem:[#allocation3 + $0x28] sm:$0xff]
          %v1304 = vld [vmem:[#allocation3 + $0x30] sm:$0xff]
          %v1305 = vld [vmem:[#allocation3 + $0x38] sm:$0xff]
          %v1306 = vld [vmem:[#allocation3 + $0x40] sm:$0xff]
          %v1307 = vld [vmem:[#allocation3 + $0x48] sm:$0xff]
          %v1308 = vld [vmem:[#allocation3 + $0x50] sm:$0xff]
          %v1309 = vld [vmem:[#allocation3 + $0x58] sm:$0xff]
          %v1310 = vld [vmem:[#allocation3 + $0x60] sm:$0xff]
          %v1311 = vld [vmem:[#allocation3 + $0x68] sm:$0xff]
          %v1312 = vld [vmem:[#allocation3 + $0x70] sm:$0xff]
          %v1313 = vld [vmem:[#allocation3 + $0x78] sm:$0xff]
          %v1314 = vrcp.pop %v1298
          %v1315 = vrcp.pop %v1299
          %v1316 = vrcp.pop %v1300
          %v1317 = vrcp.pop %v1301
          %v1318 = vrcp.pop %v1302
          %v1319 = vrcp.pop %v1303
          %v1320 = vrcp.pop %v1304
          %v1321 = vrcp.pop %v1305
          %v1322 = vrcp.pop %v1306
          %v1323 = vrcp.pop %v1307
          %v1324 = vrcp.pop %v1308
          %v1325 = vrcp.pop %v1309
          %v1326 = vrcp.pop %v1310
          %v1327 = vrcp.pop %v1311
          %v1328 = vrcp.pop %v1312
          %v1329 = vrcp.pop %v1313
          %1331 = vset.pattern.permute.xlu0 0
          %1332 = vperm.xlu0 %1331, %v1314
          %v1333 = vpop.permute.xlu0 %1332
          %1336 = vset.pattern.permute.xlu0 0
          %1337 = vperm.xlu0 %1336, %v1315
          %v1338 = vpop.permute.xlu0 %1337
          %1341 = vset.pattern.permute.xlu0 0
          %1342 = vperm.xlu0 %1341, %v1316
          %v1343 = vpop.permute.xlu0 %1342
          %1346 = vset.pattern.permute.xlu0 0
          %1347 = vperm.xlu0 %1346, %v1317
          %v1348 = vpop.permute.xlu0 %1347
          %1351 = vset.pattern.permute.xlu0 0
          %1352 = vperm.xlu0 %1351, %v1318
          %v1353 = vpop.permute.xlu0 %1352
          %1356 = vset.pattern.permute.xlu0 0
          %1357 = vperm.xlu0 %1356, %v1319
          %v1358 = vpop.permute.xlu0 %1357
          %1361 = vset.pattern.permute.xlu0 0
          %1362 = vperm.xlu0 %1361, %v1320
          %v1363 = vpop.permute.xlu0 %1362
          %1366 = vset.pattern.permute.xlu0 0
          %1367 = vperm.xlu0 %1366, %v1321
          %v1368 = vpop.permute.xlu0 %1367
          %1371 = vset.pattern.permute.xlu0 0
          %1372 = vperm.xlu0 %1371, %v1322
          %v1373 = vpop.permute.xlu0 %1372
          %1376 = vset.pattern.permute.xlu0 0
          %1377 = vperm.xlu0 %1376, %v1323
          %v1378 = vpop.permute.xlu0 %1377
          %1381 = vset.pattern.permute.xlu0 0
          %1382 = vperm.xlu0 %1381, %v1324
          %v1383 = vpop.permute.xlu0 %1382
          %1386 = vset.pattern.permute.xlu0 0
          %1387 = vperm.xlu0 %1386, %v1325
          %v1388 = vpop.permute.xlu0 %1387
          %1391 = vset.pattern.permute.xlu0 0
          %1392 = vperm.xlu0 %1391, %v1326
          %v1393 = vpop.permute.xlu0 %1392
          %1396 = vset.pattern.permute.xlu0 0
          %1397 = vperm.xlu0 %1396, %v1327
          %v1398 = vpop.permute.xlu0 %1397
          %1401 = vset.pattern.permute.xlu0 0
          %1402 = vperm.xlu0 %1401, %v1328
          %v1403 = vpop.permute.xlu0 %1402
          %1406 = vset.pattern.permute.xlu0 0
          %1407 = vperm.xlu0 %1406, %v1329
          %v1408 = vpop.permute.xlu0 %1407
          %v1410 = vmul.f32 %v1282, %v1333
          %v1411 = vmul.f32 %v1283, %v1338
          %v1412 = vmul.f32 %v1284, %v1343
          %v1413 = vmul.f32 %v1285, %v1348
          %v1414 = vmul.f32 %v1286, %v1353
          %v1415 = vmul.f32 %v1287, %v1358
          %v1416 = vmul.f32 %v1288, %v1363
          %v1417 = vmul.f32 %v1289, %v1368
          %v1418 = vmul.f32 %v1290, %v1373
          %v1419 = vmul.f32 %v1291, %v1378
          %v1420 = vmul.f32 %v1292, %v1383
          %v1421 = vmul.f32 %v1293, %v1388
          %v1422 = vmul.f32 %v1294, %v1393
          %v1423 = vmul.f32 %v1295, %v1398
          %v1424 = vmul.f32 %v1296, %v1403
          %v1425 = vmul.f32 %v1297, %v1408
          %v1426 = vpack.c.bf16 %v1411, %v1410
          %v1427 = vpack.c.bf16 %v1413, %v1412
          %v1428 = vpack.c.bf16 %v1415, %v1414
          %v1429 = vpack.c.bf16 %v1417, %v1416
          %v1430 = vpack.c.bf16 %v1419, %v1418
          %v1431 = vpack.c.bf16 %v1421, %v1420
          %v1432 = vpack.c.bf16 %v1423, %v1422
          %v1433 = vpack.c.bf16 %v1425, %v1424
          %v1434 = vld [vmem:[%s3] sm:$0xf]
          %v1435 = vld [vmem:[%s3 + $0x4] sm:$0xf]
          %v1436 = vld [vmem:[%s3 + $0x8] sm:$0xf]
          %v1437 = vld [vmem:[%s3 + $0xc] sm:$0xf]
          %v1438 = vld [vmem:[%s3 + $0x10] sm:$0xf]
          %v1439 = vld [vmem:[%s3 + $0x14] sm:$0xf]
          %v1440 = vld [vmem:[%s3 + $0x18] sm:$0xf]
          %v1441 = vld [vmem:[%s3 + $0x1c] sm:$0xf]
          %v1442 = vld [vmem:[%s3 + $0x20] sm:$0xf]
          %v1443 = vld [vmem:[%s3 + $0x24] sm:$0xf]
          %v1444 = vld [vmem:[%s3 + $0x28] sm:$0xf]
          %v1445 = vld [vmem:[%s3 + $0x2c] sm:$0xf]
          %v1446 = vld [vmem:[%s3 + $0x30] sm:$0xf]
          %v1447 = vld [vmem:[%s3 + $0x34] sm:$0xf]
          %v1448 = vld [vmem:[%s3 + $0x38] sm:$0xf]
          %v1449 = vld [vmem:[%s3 + $0x3c] sm:$0xf]
          %v1450 = vld [vmem:[%s4] sm:$0x1]
          %v1452 = vlaneseq
          %v1453 = vshrl.u32 %v1452, 7
          %v1454 = vsub.s32 0, %v1453
          %v1455 = vrot.slane %v1450, %v1454
          %v1473 = vunpack.c.l.b16 %v1434
          %v1474 = vunpack.c.l.b16 %v1435
          %v1475 = vunpack.c.l.b16 %v1436
          %v1476 = vunpack.c.l.b16 %v1437
          %v1477 = vunpack.c.l.b16 %v1438
          %v1478 = vunpack.c.l.b16 %v1439
          %v1479 = vunpack.c.l.b16 %v1440
          %v1480 = vunpack.c.l.b16 %v1441
          %v1481 = vunpack.c.l.b16 %v1442
          %v1482 = vunpack.c.l.b16 %v1443
          %v1483 = vunpack.c.l.b16 %v1444
          %v1484 = vunpack.c.l.b16 %v1445
          %v1485 = vunpack.c.l.b16 %v1446
          %v1486 = vunpack.c.l.b16 %v1447
          %v1487 = vunpack.c.l.b16 %v1448
          %v1488 = vunpack.c.l.b16 %v1449
          %v1489 = vpack.c.b16 %v1474, %v1473
          %v1490 = vpack.c.b16 %v1476, %v1475
          %v1491 = vpack.c.b16 %v1478, %v1477
          %v1492 = vpack.c.b16 %v1480, %v1479
          %v1493 = vpack.c.b16 %v1482, %v1481
          %v1494 = vpack.c.b16 %v1484, %v1483
          %v1495 = vpack.c.b16 %v1486, %v1485
          %v1496 = vpack.c.b16 %v1488, %v1487
          %1505 = vmatprep.subr.bf16.mxu0 0
          %1506 = vmatpush1.bf16.msra.mxu0 %v1489
          %1507 = vmatprep.subr.bf16.mxu0 0
          %1508 = vmatpush1.bf16.msra.mxu0 %v1490
          %1509 = vmatprep.subr.bf16.mxu0 0
          %1510 = vmatpush1.bf16.msra.mxu0 %v1491
          %1511 = vmatprep.subr.bf16.mxu0 0
          %1512 = vmatpush1.bf16.msra.mxu0 %v1492
          %1513 = vmatprep.subr.bf16.mxu0 0
          %1514 = vmatpush1.bf16.msra.mxu0 %v1493
          %1515 = vmatprep.subr.bf16.mxu0 0
          %1516 = vmatpush1.bf16.msra.mxu0 %v1494
          %1517 = vmatprep.subr.bf16.mxu0 0
          %1518 = vmatpush1.bf16.msra.mxu0 %v1495
          %1519 = vmatprep.subr.bf16.mxu0 0
          %1520 = vmatpush1.bf16.msra.mxu0 %v1496
          %1521 = vmatprep.subr.bf16.mxu0 0
          %1522 = vmatpush1.bf16.msra.mxu0 0
          %1523 = vmatprep.subr.bf16.mxu0 0
          %1524 = vmatpush1.bf16.msra.mxu0 0
          %1525 = vmatprep.subr.bf16.mxu0 0
          %1526 = vmatpush1.bf16.msra.mxu0 0
          %1527 = vmatprep.subr.bf16.mxu0 0
          %1528 = vmatpush1.bf16.msra.mxu0 0
          %1529 = vmatprep.subr.bf16.mxu0 0
          %1530 = vmatpush1.bf16.msra.mxu0 0
          %1531 = vmatprep.subr.bf16.mxu0 0
          %1532 = vmatpush1.bf16.msra.mxu0 0
          %1533 = vmatprep.subr.bf16.mxu0 0
          %1534 = vmatpush1.bf16.msra.mxu0 0
          %1535 = vmatprep.subr.bf16.mxu0 0
          %1536 = vmatpush1.bf16.msra.mxu0 0
          %1537 = vmatprep.mubr.bf16.mxu0 0
          %1538 = vmatmul.mubr.bf16.gmra.mrb[0].mxu0 %v1426
          %v1539 = vpop.f32.mrb[0].mxu0
          %v1540 = vadd.f32 %v1455, %v1539
          %v1541 = vpop.f32.mrb[0].mxu0
          %v1542 = vpop.f32.mrb[0].mxu0
          %v1543 = vadd.f32 %v1455, %v1542
          %v1544 = vpop.f32.mrb[0].mxu0
          %1545 = vmatprep.mubr.bf16.mxu0 0
          %1546 = vmatmul.mubr.bf16.gmra.mrb[0].mxu0 %v1427
          %v1547 = vpop.f32.mrb[0].mxu0
          %v1548 = vadd.f32 %v1455, %v1547
          %v1549 = vpop.f32.mrb[0].mxu0
          %v1550 = vpop.f32.mrb[0].mxu0
          %v1551 = vadd.f32 %v1455, %v1550
          %v1552 = vpop.f32.mrb[0].mxu0
          %1553 = vmatprep.mubr.bf16.mxu0 0
          %1554 = vmatmul.mubr.bf16.gmra.mrb[0].mxu0 %v1428
          %v1555 = vpop.f32.mrb[0].mxu0
          %v1556 = vadd.f32 %v1455, %v1555
          %v1557 = vpop.f32.mrb[0].mxu0
          %v1558 = vpop.f32.mrb[0].mxu0
          %v1559 = vadd.f32 %v1455, %v1558
          %v1560 = vpop.f32.mrb[0].mxu0
          %1561 = vmatprep.mubr.bf16.mxu0 0
          %1562 = vmatmul.mubr.bf16.gmra.mrb[0].mxu0 %v1429
          %v1563 = vpop.f32.mrb[0].mxu0
          %v1564 = vadd.f32 %v1455, %v1563
          %v1565 = vpop.f32.mrb[0].mxu0
          %v1566 = vpop.f32.mrb[0].mxu0
          %v1567 = vadd.f32 %v1455, %v1566
          %v1568 = vpop.f32.mrb[0].mxu0
          %1569 = vmatprep.mubr.bf16.mxu0 0
          %1570 = vmatmul.mubr.bf16.gmra.mrb[0].mxu0 %v1430
          %v1571 = vpop.f32.mrb[0].mxu0
          %v1572 = vadd.f32 %v1455, %v1571
          %v1573 = vpop.f32.mrb[0].mxu0
          %v1574 = vpop.f32.mrb[0].mxu0
          %v1575 = vadd.f32 %v1455, %v1574
          %v1576 = vpop.f32.mrb[0].mxu0
          %1577 = vmatprep.mubr.bf16.mxu0 0
          %1578 = vmatmul.mubr.bf16.gmra.mrb[0].mxu0 %v1431
          %v1579 = vpop.f32.mrb[0].mxu0
          %v1580 = vadd.f32 %v1455, %v1579
          %v1581 = vpop.f32.mrb[0].mxu0
          %v1582 = vpop.f32.mrb[0].mxu0
          %v1583 = vadd.f32 %v1455, %v1582
          %v1584 = vpop.f32.mrb[0].mxu0
          %1585 = vmatprep.mubr.bf16.mxu0 0
          %1586 = vmatmul.mubr.bf16.gmra.mrb[0].mxu0 %v1432
          %v1587 = vpop.f32.mrb[0].mxu0
          %v1588 = vadd.f32 %v1455, %v1587
          %v1589 = vpop.f32.mrb[0].mxu0
          %v1590 = vpop.f32.mrb[0].mxu0
          %v1591 = vadd.f32 %v1455, %v1590
          %v1592 = vpop.f32.mrb[0].mxu0
          %1593 = vmatprep.mubr.bf16.mxu0 0
          %1594 = vmatmul.mubr.bf16.gmra.mrb[0].mxu0 %v1433
          %v1595 = vpop.f32.mrb[0].mxu0
          %v1596 = vadd.f32 %v1455, %v1595
          %v1597 = vpop.f32.mrb[0].mxu0
          %v1598 = vpop.f32.mrb[0].mxu0
          %v1599 = vadd.f32 %v1455, %v1598
          %v1600 = vpop.f32.mrb[0].mxu0
          %1601 = vdwg.mxu0
          %1602 = vst [vmem:[%s301] sm:$0xff] %v1540
          %1603 = vst [vmem:[%s301 + $0x8] sm:$0xff] %v1543
          %1604 = vst [vmem:[%s301 + $0x10] sm:$0xff] %v1548
          %1605 = vst [vmem:[%s301 + $0x18] sm:$0xff] %v1551
          %1606 = vst [vmem:[%s301 + $0x20] sm:$0xff] %v1556
          %1607 = vst [vmem:[%s301 + $0x28] sm:$0xff] %v1559
          %1608 = vst [vmem:[%s301 + $0x30] sm:$0xff] %v1564
          %1609 = vst [vmem:[%s301 + $0x38] sm:$0xff] %v1567
          %1610 = vst [vmem:[%s301 + $0x40] sm:$0xff] %v1572
          %1611 = vst [vmem:[%s301 + $0x48] sm:$0xff] %v1575
          %1612 = vst [vmem:[%s301 + $0x50] sm:$0xff] %v1580
          %1613 = vst [vmem:[%s301 + $0x58] sm:$0xff] %v1583
          %1614 = vst [vmem:[%s301 + $0x60] sm:$0xff] %v1588
          %1615 = vst [vmem:[%s301 + $0x68] sm:$0xff] %v1591
          %1616 = vst [vmem:[%s301 + $0x70] sm:$0xff] %v1596
          %1617 = vst [vmem:[%s301 + $0x78] sm:$0xff] %v1599
        $region48: #{xformers_attention_pallas.3} parent=39 // pred_fallthru
          _
        %s1618 = sand.u32 %s174, 1
        %s1619 = scalar_lea.sflag [#allocation6], %s1618
        %s1620 = sand.u32 %s174, 1
        %s1621 = smul.addr %s1620, 128
        %s1622 = scalar_lea.vmem [#allocation5], %s1621
        // Predicated region
        $region49: #{xformers_attention_pallas.3} parent=39 // pred_check
          %p1623 = pneg %p184
        $region50: #{xformers_attention_pallas.3} parent=39 // pred_check_branch
          %1625 = sbr.rel (%p1623) target = $region52
        $region51: #{xformers_attention_pallas.3} parent=39 // pred_region
          %s1626 = smul.u32 16, %s25
          %s1628 = ssub.s32 2048, 2048
          %1629 = vsyncadd %s1619, %s1628
          %s1630 = smul.addr %s24, 32
          %s1631 = sadd.s32 %s1626, %s1630
          %s1632 = smul.addr %s1631, 128
          %s1633 = scalar_lea.hbm %s5, %s1632
          %s1634 = sshll.u32 %s1622, 4
          %s1635 = int_to_ptr.vmem [resolvable:$true] %s1634
          %1640 = dma.vmem_to_hbm [thread:$0]  %s1635, 2048, %s1633, %s1619, 128, 128, 8
        $region52: #{xformers_attention_pallas.3} parent=39 // pred_fallthru
          _
      $region40: #{xformers_attention_pallas.3} parent=5 // pred_fallthru
        _
      %p1641 = scmp.le.s32.totalorder 2, %s14
      // Predicated region
      $region53: #{xformers_attention_pallas.3} parent=5 // pred_check
        %p1642 = pneg %p1641
      $region54: #{xformers_attention_pallas.3} parent=5 // pred_check_branch
        %1644 = sbr.rel (%p1642) target = $region56
      $region55: #{xformers_attention_pallas.3} parent=5 // pred_region
        %s1645 = ssub.s32 %s14, 2
        // Predicated region
        $region57: #{xformers_attention_pallas.3} parent=55 // pred_check
          %p1646 = pneg %p190
        $region58: #{xformers_attention_pallas.3} parent=55 // pred_check_branch
          %1648 = sbr.rel (%p1646) target = $region60
        $region59: #{xformers_attention_pallas.3} parent=55 // pred_region
          %s1649 = sand.u32 %s175, 1
          %s1650 = scalar_lea.sflag [#allocation6], %s1649
          %s1651 = sand.u32 %s175, 1
          %s1652 = smul.addr %s1651, 128
          %s1653 = scalar_lea.vmem [#allocation5], %s1652
          %1654 = dma.done %s1650, 2048
        $region60: #{xformers_attention_pallas.3} parent=55 // pred_fallthru
          _
      $region56: #{xformers_attention_pallas.3} parent=5 // pred_fallthru
        _
    $region6: #{xformers_attention_pallas.3} parent=1 // loop_footer
      %s18 = sadd.s32 1, %s14
    $region7: #{xformers_attention_pallas.3} parent=1 // loop_footer_branch
      %13 = sbr.rel target = $region3
    $region8: #{xformers_attention_pallas.3} parent=1 // loop_exit
      _
    %1655 = vsyncpa [#allocation6], 1
    %s1656 = scalar_lea.sflag [#allocation6], 1
    %1657 = vsyncpa %s1656, 1

</llo_original>
